<compile_context>
chip_gen: v7x
topology: tpu7x:2x2x1
jax: 0.10.0
libtpu: 0.0.40
codegen_flags: <defaults>
</compile_context>

<pallas_src>
import functools

import jax
import jax.numpy as jnp
from jax.experimental import pallas as pl
from jax.experimental.pallas import tpu as pltpu

_SQRT2 = 1.4142135623730951


def _gelu_exact(x):
    # torch.nn.GELU() default = exact (erf-based) GELU
    return 0.5 * x * (1.0 + jax.lax.erf(x / _SQRT2))


def bottleneck_kernel(x_ref, w1_ref, b1_ref,
                      lng_ref, lnb_ref,
                      mw1_ref, mb1_ref, mw2_ref, mb2_ref,
                      cw1_ref, cb1_ref, cw2_ref, cb2_ref,
                      o_ref, y_sc, skip_sc, *, eps):
    """Grid = (batch, group).  Activations are (F, HW): channels x pixels."""
    g = pl.program_id(1)

    # ---- g == 0: pointwise conv (channel-major matmul) seeds both accumulators.
    @pl.when(g == 0)
    def _init():
        x = x_ref[0].astype(jnp.bfloat16)                          # (C, HW)
        y0 = jnp.dot(w1_ref[...], x,
                     preferred_element_type=jnp.float32) + b1_ref[...]
        y_sc[...] = y0
        skip_sc[...] = y0

    y = y_sc[...]                                                  # (F, HW) f32

    # ---- LayerNorm over channels (axis 0), single-pass biased variance.
    mu = jnp.mean(y, axis=0, keepdims=True)                        # (1, HW)
    ms = jnp.mean(y * y, axis=0, keepdims=True)
    var = jnp.maximum(ms - mu * mu, 0.0)
    z = (y - mu) * jax.lax.rsqrt(var + eps)
    z = z * lng_ref[0] + lnb_ref[0]                                # (F,1) bcast

    # ---- MLPBlock: Linear(F->Dm) + GELU + Linear(Dm->F)   (dropout = 0)
    h = jnp.dot(mw1_ref[0], z.astype(jnp.bfloat16),
                preferred_element_type=jnp.float32) + mb1_ref[0]   # (Dm, HW)
    h = _gelu_exact(h)
    z2 = jnp.dot(mw2_ref[0], h.astype(jnp.bfloat16),
                 preferred_element_type=jnp.float32) + mb2_ref[0]  # (F, HW)

    # ---- ChannelAttentionLayer (squeeze & excite; tiny column matmuls).
    pooled = jnp.mean(z2, axis=1, keepdims=True)                   # (F, 1)
    a = jnp.dot(cw1_ref[0], pooled,
                preferred_element_type=jnp.float32) + cb1_ref[0]   # (Dr, 1)
    a = jnp.maximum(a, 0.0)
    gate = jnp.dot(cw2_ref[0], a,
                   preferred_element_type=jnp.float32) + cb2_ref[0]  # (F, 1)
    gate = jax.nn.sigmoid(gate)

    # ---- residual inside RDCAB.
    y = y + z2 * gate
    y_sc[...] = y

    # ---- g == G-1: add long skip around all groups and store.
    @pl.when(g == pl.num_programs(1) - 1)
    def _finalize():
        o_ref[0] = (y + skip_sc[...]).astype(o_ref.dtype)


def bottleneck_block(x_nchw, params, *, eps=1e-5):
    (w1, b1, lng, lnb, mw1, mb1, mw2, mb2, cw1, cb1, cw2, cb2) = params
    N, C, H, W = x_nchw.shape
    F = w1.shape[0]
    G, Dm, _ = mw1.shape
    Dr = cw1.shape[1]
    HW = H * W

    # Native NCHW layout: no transpose, just flatten spatial dims so the HW
    # axis is the lane-dense minor dimension of every block / store.
    x = x_nchw.reshape(N, C, HW)

    # bf16 weights for the MXU matmuls (activations cast in-kernel, f32 accum).
    w1_b = w1.astype(jnp.bfloat16)
    mw1_b = mw1.astype(jnp.bfloat16)
    mw2_b = mw2.astype(jnp.bfloat16)

    def shared(arr):
        nd = arr.ndim
        return pl.BlockSpec(arr.shape, lambda n, g, _nd=nd: (0,) * _nd)

    def per_group(arr):
        blk = (1,) + arr.shape[1:]
        nz = arr.ndim - 1
        return pl.BlockSpec(blk, lambda n, g, _nz=nz: (g,) + (0,) * _nz)

    kernel = functools.partial(bottleneck_kernel, eps=eps)

    flops = int(2 * N * HW * C * F
                + G * N * (4 * HW * F * Dm + 4 * F * Dr)
                + G * N * HW * (10 * F + 2 * Dm))
    transcendentals = int(G * N * (HW * Dm + HW + 2 * F))
    bytes_accessed = int(
        (x.size + N * F * HW) * 4
        + (w1_b.size + mw1_b.size + mw2_b.size) * 2
        + (b1.size + lng.size + lnb.size + mb1.size + mb2.size
           + cw1.size + cb1.size + cw2.size + cb2.size) * 4)

    out = pl.pallas_call(
        kernel,
        out_shape=jax.ShapeDtypeStruct((N, F, HW), x.dtype),
        grid_spec=pltpu.PrefetchScalarGridSpec(
            num_scalar_prefetch=0,
            grid=(N, G),
            in_specs=[
                # x block index is constant over g -> stays resident in VMEM
                # for the whole group sweep (fetched once per batch element).
                pl.BlockSpec((1, C, HW), lambda n, g: (n, 0, 0)),
                shared(w1_b), shared(b1),
                per_group(lng), per_group(lnb),
                per_group(mw1_b), per_group(mb1),
                per_group(mw2_b), per_group(mb2),
                per_group(cw1), per_group(cb1),
                per_group(cw2), per_group(cb2),
            ],
            # Output block index constant over g -> resident accumulator,
            # written back to HBM once per batch element.
            out_specs=pl.BlockSpec((1, F, HW), lambda n, g: (n, 0, 0)),
            scratch_shapes=[
                pltpu.VMEM((F, HW), jnp.float32),   # running activation y
                pltpu.VMEM((F, HW), jnp.float32),   # long skip (conv1x1 out)
            ],
        ),
        compiler_params=pltpu.CompilerParams(
            dimension_semantics=("parallel", "arbitrary")),
        cost_estimate=pl.CostEstimate(
            flops=flops, transcendentals=transcendentals,
            bytes_accessed=bytes_accessed),
    )(x, w1_b, b1, lng, lnb, mw1_b, mb1, mw2_b, mb2, cw1, cb1, cw2, cb2)

    return out.reshape(N, F, H, W)


def init_params(key, in_channel, features, num_groups, channels_reduction):
    """Deterministic synthetic parameters; (out_features, in_features) layout
    with column-shaped biases, mirroring the PyTorch module's math."""
    C, F = in_channel, features
    Dm = features                              # MLPBlock mlp_dim = features
    Dr = features // channels_reduction        # CAL hidden = out_dim // reduction
    G = num_groups
    ks = jax.random.split(key, 12)

    def rnd(k, shape, scale=0.1):
        return scale * jax.random.normal(k, shape, dtype=jnp.float32)

    w1 = rnd(ks[0], (F, C))                    # conv1x1 weight
    b1 = rnd(ks[1], (F, 1))
    lng = 1.0 + rnd(ks[2], (G, F, 1))          # LayerNorm gamma
    lnb = rnd(ks[3], (G, F, 1))                # LayerNorm beta
    mw1 = rnd(ks[4], (G, Dm, F))
    mb1 = rnd(ks[5], (G, Dm, 1))
    mw2 = rnd(ks[6], (G, F, Dm))
    mb2 = rnd(ks[7], (G, F, 1))
    cw1 = rnd(ks[8], (G, Dr, F))
    cb1 = rnd(ks[9], (G, Dr, 1))
    cw2 = rnd(ks[10], (G, F, Dr))
    cb2 = rnd(ks[11], (G, F, 1))
    return (w1, b1, lng, lnb, mw1, mb1, mw2, mb2, cw1, cb1, cw2, cb2)


def reference(x_nchw, params, eps=1e-5):
    """Plain-JAX f32 reference mirroring the PyTorch forward (verification)."""
    (w1, b1, lng, lnb, mw1, mb1, mw2, mb2, cw1, cb1, cw2, cb2) = params
    N, C, H, W = x_nchw.shape
    F = w1.shape[0]
    G = mw1.shape[0]
    x = x_nchw.reshape(N, C, H * W)
    y = jnp.einsum('fc,nch->nfh', w1, x) + b1          # conv1x1
    shortcut = y
    for g in range(G):
        mu = jnp.mean(y, axis=1, keepdims=True)
        var = jnp.mean((y - mu) ** 2, axis=1, keepdims=True)
        z = (y - mu) / jnp.sqrt(var + eps) * lng[g] + lnb[g]
        h = _gelu_exact(jnp.einsum('df,nfh->ndh', mw1[g], z) + mb1[g])
        z2 = jnp.einsum('fd,ndh->nfh', mw2[g], h) + mb2[g]
        pooled = jnp.mean(z2, axis=2, keepdims=True)
        a = jnp.maximum(jnp.einsum('rf,nrh->nrh'.replace('nrh', 'nfh', 1)
                                   if False else 'rf,nfh->nrh',
                                   cw1[g], pooled) + cb1[g], 0.0)
        gate = jax.nn.sigmoid(jnp.einsum('fr,nrh->nfh', cw2[g], a) + cb2[g])
        y = y + z2 * gate
    y = y + shortcut
    return y.reshape(N, F, H, W)


if __name__ == "__main__":
    # NOTE: the PyTorch module only typechecks when in_channel == features
    # (the RDCABs are built with in_channel but applied after conv1x1).
    N, C, H, W = 2, 32, 16, 16          # HW = 256 -> lane-dense minor dim
    features = 32
    num_groups = 2
    channels_reduction = 4

    key = jax.random.PRNGKey(0)
    k_x, k_p = jax.random.split(key)
    x = jax.random.normal(k_x, (N, C, H, W), dtype=jnp.float32)
    params = init_params(k_p, C, features, num_groups, channels_reduction)

    out = jax.block_until_ready(bottleneck_block(x, params))
    ref = reference(x, params)

    assert out.shape == (N, features, H, W)
    max_err = float(jnp.max(jnp.abs(out - ref)))
    # bf16 matmuls with f32 accumulation vs. the pure-f32 reference.
    assert jnp.allclose(out, ref, atol=5e-2, rtol=5e-2), max_err

    print("KERNEL_OK")
</pallas_src>

<mosaic_0001>
module attributes {stable_mosaic.version = 11 : i64} {
  func.func @bottleneck_kernel(%arg0: i32, %arg1: i32, %arg2: memref<1x32x256xf32, #tpu.memory_space<vmem>>, %arg3: memref<32x32xbf16, #tpu.memory_space<vmem>>, %arg4: memref<32x1xf32, #tpu.memory_space<vmem>>, %arg5: memref<1x32x1xf32, #tpu.memory_space<vmem>>, %arg6: memref<1x32x1xf32, #tpu.memory_space<vmem>>, %arg7: memref<1x32x32xbf16, #tpu.memory_space<vmem>>, %arg8: memref<1x32x1xf32, #tpu.memory_space<vmem>>, %arg9: memref<1x32x32xbf16, #tpu.memory_space<vmem>>, %arg10: memref<1x32x1xf32, #tpu.memory_space<vmem>>, %arg11: memref<1x8x32xf32, #tpu.memory_space<vmem>>, %arg12: memref<1x8x1xf32, #tpu.memory_space<vmem>>, %arg13: memref<1x32x8xf32, #tpu.memory_space<vmem>>, %arg14: memref<1x32x1xf32, #tpu.memory_space<vmem>>, %arg15: memref<1x32x256xf32, #tpu.memory_space<vmem>>, %arg16: memref<32x256xf32, #tpu.memory_space<vmem>>, %arg17: memref<32x256xf32, #tpu.memory_space<vmem>>) attributes {dimension_semantics = [#tpu.dimension_semantics<parallel>, #tpu.dimension_semantics<arbitrary>], iteration_bounds = array<i64: 2, 2>, scalar_prefetch = 0 : i64, scratch_operands = 2 : i64, tpu.core_type = #tpu.core_type<tc>, window_params = [{transform_indices = @transform_0, window_bounds = array<i64: 1, 32, 256>}, {pipeline_mode = #tpu.pipeline_mode<synchronous>, transform_indices = @transform_1, window_bounds = array<i64: 32, 32>}, {pipeline_mode = #tpu.pipeline_mode<synchronous>, transform_indices = @transform_2, window_bounds = array<i64: 32, 1>}, {transform_indices = @transform_3, window_bounds = array<i64: 1, 32, 1>}, {transform_indices = @transform_4, window_bounds = array<i64: 1, 32, 1>}, {transform_indices = @transform_5, window_bounds = array<i64: 1, 32, 32>}, {transform_indices = @transform_6, window_bounds = array<i64: 1, 32, 1>}, {transform_indices = @transform_7, window_bounds = array<i64: 1, 32, 32>}, {transform_indices = @transform_8, window_bounds = array<i64: 1, 32, 1>}, {transform_indices = @transform_9, window_bounds = array<i64: 1, 8, 32>}, {transform_indices = @transform_10, window_bounds = array<i64: 1, 8, 1>}, {transform_indices = @transform_11, window_bounds = array<i64: 1, 32, 8>}, {transform_indices = @transform_12, window_bounds = array<i64: 1, 32, 1>}, {transform_indices = @transform_13, window_bounds = array<i64: 1, 32, 256>}]} {
    %c0_i32 = arith.constant 0 : i32
    %0 = arith.cmpi eq, %arg1, %c0_i32 : i32
    %1 = arith.extui %0 : i1 to i32
    %c0_i32_0 = arith.constant 0 : i32
    %2 = arith.cmpi ne, %1, %c0_i32_0 : i32
    scf.if %2 {
      %c0_51 = arith.constant 0 : index
      %c0_52 = arith.constant 0 : index
      %c0_53 = arith.constant 0 : index
      %86 = vector.load %arg2[%c0_51, %c0_52, %c0_53] : memref<1x32x256xf32, #tpu.memory_space<vmem>>, vector<1x32x256xf32>
      %87 = vector.shape_cast %86 : vector<1x32x256xf32> to vector<32x256xf32>
      %88 = arith.truncf %87 : vector<32x256xf32> to vector<32x256xbf16>
      %c0_54 = arith.constant 0 : index
      %c0_55 = arith.constant 0 : index
      %89 = vector.load %arg3[%c0_54, %c0_55] : memref<32x32xbf16, #tpu.memory_space<vmem>>, vector<32x32xbf16>
      %cst_56 = arith.constant dense<0.000000e+00> : vector<32x256xf32>
      %90 = tpu.matmul %89, %88, %cst_56 {dimension_numbers = #tpu.dot_dimension_numbers<[1], [0], [0], [1], [0, 0, 1, 1], [], []>} : vector<32x32xbf16>, vector<32x256xbf16>, vector<32x256xf32> -> vector<32x256xf32>
      %c0_57 = arith.constant 0 : index
      %c0_58 = arith.constant 0 : index
      %91 = vector.load %arg4[%c0_57, %c0_58] : memref<32x1xf32, #tpu.memory_space<vmem>>, vector<32x1xf32>
      %92 = vector.broadcast %91 : vector<32x1xf32> to vector<32x256xf32>
      %93 = arith.addf %90, %92 : vector<32x256xf32>
      %c0_59 = arith.constant 0 : index
      %c0_60 = arith.constant 0 : index
      %94 = vector.load %arg16[%c0_59, %c0_60] : memref<32x256xf32, #tpu.memory_space<vmem>>, vector<32x256xf32>
      tpu.vector_store %arg16[%c0_59, %c0_60], %93 {strides = array<i32>} : memref<32x256xf32, #tpu.memory_space<vmem>>, vector<32x256xf32>,
      %c0_61 = arith.constant 0 : index
      %c0_62 = arith.constant 0 : index
      %95 = vector.load %arg17[%c0_61, %c0_62] : memref<32x256xf32, #tpu.memory_space<vmem>>, vector<32x256xf32>
      tpu.vector_store %arg17[%c0_61, %c0_62], %93 {strides = array<i32>} : memref<32x256xf32, #tpu.memory_space<vmem>>, vector<32x256xf32>,
    } else {
    }
    %c0 = arith.constant 0 : index
    %c0_1 = arith.constant 0 : index
    %3 = vector.load %arg16[%c0, %c0_1] : memref<32x256xf32, #tpu.memory_space<vmem>>, vector<32x256xf32>
    %cst = arith.constant dense<0.000000e+00> : vector<256xf32>
    %4 = vector.multi_reduction <add>, %3, %cst [0] : vector<32x256xf32> to vector<256xf32>
    %5 = vector.shape_cast %4 : vector<256xf32> to vector<1x256xf32>
    %cst_2 = arith.constant 3.200000e+01 : f32
    %6 = vector.broadcast %cst_2 : f32 to vector<1x256xf32>
    %7 = arith.divf %5, %6 : vector<1x256xf32>
    %8 = arith.mulf %3, %3 : vector<32x256xf32>
    %cst_3 = arith.constant dense<0.000000e+00> : vector<256xf32>
    %9 = vector.multi_reduction <add>, %8, %cst_3 [0] : vector<32x256xf32> to vector<256xf32>
    %10 = vector.shape_cast %9 : vector<256xf32> to vector<1x256xf32>
    %cst_4 = arith.constant 3.200000e+01 : f32
    %11 = vector.broadcast %cst_4 : f32 to vector<1x256xf32>
    %12 = arith.divf %10, %11 : vector<1x256xf32>
    %13 = arith.mulf %7, %7 : vector<1x256xf32>
    %14 = arith.subf %12, %13 : vector<1x256xf32>
    %cst_5 = arith.constant 0.000000e+00 : f32
    %15 = vector.broadcast %cst_5 : f32 to vector<1x256xf32>
    %16 = arith.maximumf %14, %15 : vector<1x256xf32>
    %17 = vector.broadcast %7 : vector<1x256xf32> to vector<32x256xf32>
    %18 = arith.subf %3, %17 : vector<32x256xf32>
    %cst_6 = arith.constant 9.99999974E-6 : f32
    %19 = vector.broadcast %cst_6 : f32 to vector<1x256xf32>
    %20 = arith.addf %16, %19 : vector<1x256xf32>
    %21 = math.rsqrt %20 : vector<1x256xf32>
    %22 = vector.broadcast %21 : vector<1x256xf32> to vector<32x256xf32>
    %23 = arith.mulf %18, %22 : vector<32x256xf32>
    %c0_7 = arith.constant 0 : index
    %c0_8 = arith.constant 0 : index
    %c0_9 = arith.constant 0 : index
    %24 = vector.load %arg5[%c0_7, %c0_8, %c0_9] : memref<1x32x1xf32, #tpu.memory_space<vmem>>, vector<1x32x1xf32>
    %25 = vector.shape_cast %24 : vector<1x32x1xf32> to vector<32x1xf32>
    %26 = vector.broadcast %25 : vector<32x1xf32> to vector<32x256xf32>
    %27 = arith.mulf %23, %26 : vector<32x256xf32>
    %c0_10 = arith.constant 0 : index
    %c0_11 = arith.constant 0 : index
    %c0_12 = arith.constant 0 : index
    %28 = vector.load %arg6[%c0_10, %c0_11, %c0_12] : memref<1x32x1xf32, #tpu.memory_space<vmem>>, vector<1x32x1xf32>
    %29 = vector.shape_cast %28 : vector<1x32x1xf32> to vector<32x1xf32>
    %30 = vector.broadcast %29 : vector<32x1xf32> to vector<32x256xf32>
    %31 = arith.addf %27, %30 : vector<32x256xf32>
    %c0_13 = arith.constant 0 : index
    %c0_14 = arith.constant 0 : index
    %c0_15 = arith.constant 0 : index
    %32 = vector.load %arg7[%c0_13, %c0_14, %c0_15] : memref<1x32x32xbf16, #tpu.memory_space<vmem>>, vector<1x32x32xbf16>
    %33 = vector.shape_cast %32 : vector<1x32x32xbf16> to vector<32x32xbf16>
    %34 = arith.truncf %31 : vector<32x256xf32> to vector<32x256xbf16>
    %cst_16 = arith.constant dense<0.000000e+00> : vector<32x256xf32>
    %35 = tpu.matmul %33, %34, %cst_16 {dimension_numbers = #tpu.dot_dimension_numbers<[1], [0], [0], [1], [0, 0, 1, 1], [], []>} : vector<32x32xbf16>, vector<32x256xbf16>, vector<32x256xf32> -> vector<32x256xf32>
    %c0_17 = arith.constant 0 : index
    %c0_18 = arith.constant 0 : index
    %c0_19 = arith.constant 0 : index
    %36 = vector.load %arg8[%c0_17, %c0_18, %c0_19] : memref<1x32x1xf32, #tpu.memory_space<vmem>>, vector<1x32x1xf32>
    %37 = vector.shape_cast %36 : vector<1x32x1xf32> to vector<32x1xf32>
    %38 = vector.broadcast %37 : vector<32x1xf32> to vector<32x256xf32>
    %39 = arith.addf %35, %38 : vector<32x256xf32>
    %cst_20 = arith.constant 5.000000e-01 : f32
    %40 = vector.broadcast %cst_20 : f32 to vector<32x256xf32>
    %41 = arith.mulf %40, %39 : vector<32x256xf32>
    %cst_21 = arith.constant 1.41421354 : f32
    %42 = vector.broadcast %cst_21 : f32 to vector<32x256xf32>
    %43 = arith.divf %39, %42 : vector<32x256xf32>
    %44 = math.erf %43 : vector<32x256xf32>
    %cst_22 = arith.constant 1.000000e+00 : f32
    %45 = vector.broadcast %cst_22 : f32 to vector<32x256xf32>
    %46 = arith.addf %45, %44 : vector<32x256xf32>
    %47 = arith.mulf %41, %46 : vector<32x256xf32>
    %c0_23 = arith.constant 0 : index
    %c0_24 = arith.constant 0 : index
    %c0_25 = arith.constant 0 : index
    %48 = vector.load %arg9[%c0_23, %c0_24, %c0_25] : memref<1x32x32xbf16, #tpu.memory_space<vmem>>, vector<1x32x32xbf16>
    %49 = vector.shape_cast %48 : vector<1x32x32xbf16> to vector<32x32xbf16>
    %50 = arith.truncf %47 : vector<32x256xf32> to vector<32x256xbf16>
    %cst_26 = arith.constant dense<0.000000e+00> : vector<32x256xf32>
    %51 = tpu.matmul %49, %50, %cst_26 {dimension_numbers = #tpu.dot_dimension_numbers<[1], [0], [0], [1], [0, 0, 1, 1], [], []>} : vector<32x32xbf16>, vector<32x256xbf16>, vector<32x256xf32> -> vector<32x256xf32>
    %c0_27 = arith.constant 0 : index
    %c0_28 = arith.constant 0 : index
    %c0_29 = arith.constant 0 : index
    %52 = vector.load %arg10[%c0_27, %c0_28, %c0_29] : memref<1x32x1xf32, #tpu.memory_space<vmem>>, vector<1x32x1xf32>
    %53 = vector.shape_cast %52 : vector<1x32x1xf32> to vector<32x1xf32>
    %54 = vector.broadcast %53 : vector<32x1xf32> to vector<32x256xf32>
    %55 = arith.addf %51, %54 : vector<32x256xf32>
    %cst_30 = arith.constant dense<0.000000e+00> : vector<32xf32>
    %56 = vector.multi_reduction <add>, %55, %cst_30 [1] : vector<32x256xf32> to vector<32xf32>
    %57 = vector.shape_cast %56 : vector<32xf32> to vector<32x1xf32>
    %cst_31 = arith.constant 2.560000e+02 : f32
    %58 = vector.broadcast %cst_31 : f32 to vector<32x1xf32>
    %59 = arith.divf %57, %58 : vector<32x1xf32>
    %c0_32 = arith.constant 0 : index
    %c0_33 = arith.constant 0 : index
    %c0_34 = arith.constant 0 : index
    %60 = vector.load %arg11[%c0_32, %c0_33, %c0_34] : memref<1x8x32xf32, #tpu.memory_space<vmem>>, vector<1x8x32xf32>
    %61 = vector.shape_cast %60 : vector<1x8x32xf32> to vector<8x32xf32>
    %cst_35 = arith.constant dense<0.000000e+00> : vector<8x1xf32>
    %62 = tpu.matmul %61, %59, %cst_35 {dimension_numbers = #tpu.dot_dimension_numbers<[1], [0], [0], [1], [0, 0, 1, 1], [], []>} : vector<8x32xf32>, vector<32x1xf32>, vector<8x1xf32> -> vector<8x1xf32>
    %c0_36 = arith.constant 0 : index
    %c0_37 = arith.constant 0 : index
    %c0_38 = arith.constant 0 : index
    %63 = vector.load %arg12[%c0_36, %c0_37, %c0_38] : memref<1x8x1xf32, #tpu.memory_space<vmem>>, vector<1x8x1xf32>
    %64 = vector.shape_cast %63 : vector<1x8x1xf32> to vector<8x1xf32>
    %65 = arith.addf %62, %64 : vector<8x1xf32>
    %cst_39 = arith.constant 0.000000e+00 : f32
    %66 = vector.broadcast %cst_39 : f32 to vector<8x1xf32>
    %67 = arith.maximumf %65, %66 : vector<8x1xf32>
    %c0_40 = arith.constant 0 : index
    %c0_41 = arith.constant 0 : index
    %c0_42 = arith.constant 0 : index
    %68 = vector.load %arg13[%c0_40, %c0_41, %c0_42] : memref<1x32x8xf32, #tpu.memory_space<vmem>>, vector<1x32x8xf32>
    %69 = vector.shape_cast %68 : vector<1x32x8xf32> to vector<32x8xf32>
    %cst_43 = arith.constant dense<0.000000e+00> : vector<32x1xf32>
    %70 = tpu.matmul %69, %67, %cst_43 {dimension_numbers = #tpu.dot_dimension_numbers<[1], [0], [0], [1], [0, 0, 1, 1], [], []>} : vector<32x8xf32>, vector<8x1xf32>, vector<32x1xf32> -> vector<32x1xf32>
    %c0_44 = arith.constant 0 : index
    %c0_45 = arith.constant 0 : index
    %c0_46 = arith.constant 0 : index
    %71 = vector.load %arg14[%c0_44, %c0_45, %c0_46] : memref<1x32x1xf32, #tpu.memory_space<vmem>>, vector<1x32x1xf32>
    %72 = vector.shape_cast %71 : vector<1x32x1xf32> to vector<32x1xf32>
    %73 = arith.addf %70, %72 : vector<32x1xf32>
    %74 = arith.negf %73 : vector<32x1xf32>
    %75 = math.exp %74 : vector<32x1xf32>
    %cst_47 = arith.constant 1.000000e+00 : f32
    %76 = vector.broadcast %cst_47 : f32 to vector<32x1xf32>
    %77 = arith.addf %76, %75 : vector<32x1xf32>
    %78 = arith.divf %76, %77 : vector<32x1xf32>
    %79 = vector.broadcast %78 : vector<32x1xf32> to vector<32x256xf32>
    %80 = arith.mulf %55, %79 : vector<32x256xf32>
    %81 = arith.addf %3, %80 : vector<32x256xf32>
    %c0_48 = arith.constant 0 : index
    %c0_49 = arith.constant 0 : index
    %82 = vector.load %arg16[%c0_48, %c0_49] : memref<32x256xf32, #tpu.memory_space<vmem>>, vector<32x256xf32>
    tpu.vector_store %arg16[%c0_48, %c0_49], %81 {strides = array<i32>} : memref<32x256xf32, #tpu.memory_space<vmem>>, vector<32x256xf32>,
    %c1_i32 = arith.constant 1 : i32
    %83 = arith.cmpi eq, %arg1, %c1_i32 : i32
    %84 = arith.extui %83 : i1 to i32
    %c0_i32_50 = arith.constant 0 : i32
    %85 = arith.cmpi ne, %84, %c0_i32_50 : i32
    scf.if %85 {
      %c0_51 = arith.constant 0 : index
      %c0_52 = arith.constant 0 : index
      %86 = vector.load %arg17[%c0_51, %c0_52] : memref<32x256xf32, #tpu.memory_space<vmem>>, vector<32x256xf32>
      %87 = arith.addf %81, %86 : vector<32x256xf32>
      %c0_53 = arith.constant 0 : index
      %c0_54 = arith.constant 0 : index
      %c0_55 = arith.constant 0 : index
      %88 = vector.load %arg15[%c0_53, %c0_54, %c0_55] : memref<1x32x256xf32, #tpu.memory_space<vmem>>, vector<1x32x256xf32>
      %89 = vector.shape_cast %88 : vector<1x32x256xf32> to vector<32x256xf32>
      %90 = vector.shape_cast %87 : vector<32x256xf32> to vector<1x32x256xf32>
      tpu.vector_store %arg15[%c0_53, %c0_54, %c0_55], %90 {strides = array<i32>} : memref<1x32x256xf32, #tpu.memory_space<vmem>>, vector<1x32x256xf32>,
    } else {
    }
    return
  }
  func.func @transform_0(%arg0: i32, %arg1: i32) -> (i32, i32, i32) {
    %c0_i32 = arith.constant 0 : i32
    %c0_i32_0 = arith.constant 0 : i32
    %c0_i32_1 = arith.constant 0 : i32
    return %arg0, %c0_i32, %c0_i32_0 : i32, i32, i32
  }
  func.func @transform_1(%arg0: i32, %arg1: i32) -> (i32, i32) {
    %c0_i32 = arith.constant 0 : i32
    %c0_i32_0 = arith.constant 0 : i32
    %c0_i32_1 = arith.constant 0 : i32
    return %c0_i32, %c0_i32_0 : i32, i32
  }
  func.func @transform_2(%arg0: i32, %arg1: i32) -> (i32, i32) {
    %c0_i32 = arith.constant 0 : i32
    %c0_i32_0 = arith.constant 0 : i32
    %c0_i32_1 = arith.constant 0 : i32
    return %c0_i32, %c0_i32_0 : i32, i32
  }
  func.func @transform_3(%arg0: i32, %arg1: i32) -> (i32, i32, i32) {
    %c0_i32 = arith.constant 0 : i32
    %c0_i32_0 = arith.constant 0 : i32
    %c0_i32_1 = arith.constant 0 : i32
    return %arg1, %c0_i32, %c0_i32_0 : i32, i32, i32
  }
  func.func @transform_4(%arg0: i32, %arg1: i32) -> (i32, i32, i32) {
    %c0_i32 = arith.constant 0 : i32
    %c0_i32_0 = arith.constant 0 : i32
    %c0_i32_1 = arith.constant 0 : i32
    return %arg1, %c0_i32, %c0_i32_0 : i32, i32, i32
  }
  func.func @transform_5(%arg0: i32, %arg1: i32) -> (i32, i32, i32) {
    %c0_i32 = arith.constant 0 : i32
    %c0_i32_0 = arith.constant 0 : i32
    %c0_i32_1 = arith.constant 0 : i32
    return %arg1, %c0_i32, %c0_i32_0 : i32, i32, i32
  }
  func.func @transform_6(%arg0: i32, %arg1: i32) -> (i32, i32, i32) {
    %c0_i32 = arith.constant 0 : i32
    %c0_i32_0 = arith.constant 0 : i32
    %c0_i32_1 = arith.constant 0 : i32
    return %arg1, %c0_i32, %c0_i32_0 : i32, i32, i32
  }
  func.func @transform_7(%arg0: i32, %arg1: i32) -> (i32, i32, i32) {
    %c0_i32 = arith.constant 0 : i32
    %c0_i32_0 = arith.constant 0 : i32
    %c0_i32_1 = arith.constant 0 : i32
    return %arg1, %c0_i32, %c0_i32_0 : i32, i32, i32
  }
  func.func @transform_8(%arg0: i32, %arg1: i32) -> (i32, i32, i32) {
    %c0_i32 = arith.constant 0 : i32
    %c0_i32_0 = arith.constant 0 : i32
    %c0_i32_1 = arith.constant 0 : i32
    return %arg1, %c0_i32, %c0_i32_0 : i32, i32, i32
  }
  func.func @transform_9(%arg0: i32, %arg1: i32) -> (i32, i32, i32) {
    %c0_i32 = arith.constant 0 : i32
    %c0_i32_0 = arith.constant 0 : i32
    %c0_i32_1 = arith.constant 0 : i32
    return %arg1, %c0_i32, %c0_i32_0 : i32, i32, i32
  }
  func.func @transform_10(%arg0: i32, %arg1: i32) -> (i32, i32, i32) {
    %c0_i32 = arith.constant 0 : i32
    %c0_i32_0 = arith.constant 0 : i32
    %c0_i32_1 = arith.constant 0 : i32
    return %arg1, %c0_i32, %c0_i32_0 : i32, i32, i32
  }
  func.func @transform_11(%arg0: i32, %arg1: i32) -> (i32, i32, i32) {
    %c0_i32 = arith.constant 0 : i32
    %c0_i32_0 = arith.constant 0 : i32
    %c0_i32_1 = arith.constant 0 : i32
    return %arg1, %c0_i32, %c0_i32_0 : i32, i32, i32
  }
  func.func @transform_12(%arg0: i32, %arg1: i32) -> (i32, i32, i32) {
    %c0_i32 = arith.constant 0 : i32
    %c0_i32_0 = arith.constant 0 : i32
    %c0_i32_1 = arith.constant 0 : i32
    return %arg1, %c0_i32, %c0_i32_0 : i32, i32, i32
  }
  func.func @transform_13(%arg0: i32, %arg1: i32) -> (i32, i32, i32) {
    %c0_i32 = arith.constant 0 : i32
    %c0_i32_0 = arith.constant 0 : i32
    %c0_i32_1 = arith.constant 0 : i32
    return %arg0, %c0_i32, %c0_i32_0 : i32, i32, i32
  }
}

</mosaic_0001>

<llo_original>
// kernel: tpu_custom_call.1
$region0: #{tpu_custom_call.1}
  #allocation0 [shape = 'u32[]', space=smem, size = 0x4, offset = 0x4, fixed_abs, tag = 'smem constant byte address 0x4 - core index']
  #allocation1 [shape = 'u32[144,128]{1,0:T(1,128)}', space=vmem, size = 0x12000, scoped, tag = 'internal scratch']
  #allocation2 [shape = 'f32[32,256]{1,0:T(8,128)}', space=vmem, size = 0x8000, scoped, tag = 'scratch operand']
  #allocation3 [shape = 'f32[32,256]{1,0:T(8,128)}', space=vmem, size = 0x8000, scoped, tag = 'scratch operand']
  %s0 = inlined_call_operand.vmem [shape: f32[2,32,256], index: 0, kind: input, shape index: {}]
  %s1 = inlined_call_operand.vmem [shape: bf16[32,32], index: 1, kind: input, shape index: {}]
  %s2 = inlined_call_operand.vmem [shape: f32[32,1], index: 2, kind: input, shape index: {}]
  %s3 = inlined_call_operand.vmem [shape: f32[2,32,1], index: 3, kind: input, shape index: {}]
  %s4 = inlined_call_operand.vmem [shape: f32[2,32,1], index: 4, kind: input, shape index: {}]
  %s5 = inlined_call_operand.vmem [shape: bf16[2,32,32], index: 5, kind: input, shape index: {}]
  %s6 = inlined_call_operand.vmem [shape: f32[2,32,1], index: 6, kind: input, shape index: {}]
  %s7 = inlined_call_operand.vmem [shape: bf16[2,32,32], index: 7, kind: input, shape index: {}]
  %s8 = inlined_call_operand.vmem [shape: f32[2,32,1], index: 8, kind: input, shape index: {}]
  %s9 = inlined_call_operand.vmem [shape: f32[2,8,32], index: 9, kind: input, shape index: {}]
  %s10 = inlined_call_operand.vmem [shape: f32[2,8,1], index: 10, kind: input, shape index: {}]
  %s11 = inlined_call_operand.vmem [shape: f32[2,32,8], index: 11, kind: input, shape index: {}]
  %s12 = inlined_call_operand.vmem [shape: f32[2,32,1], index: 12, kind: input, shape index: {}]
  %s13 = inlined_call_operand.hbm [shape: f32[2,32,256], index: 13, kind: output, shape index: {}]
  %s14 = sld [smem:[#allocation0]]
  $region93: #{tpu_custom_call.1} parent=0
    _
  %s16 = ssub.s32 1, %s14
  %s17 = scalar_select 0, %s16, %s14
  $region1: #{tpu_custom_call.1} parent=0
    #allocation4 [shape = 'u8[65536]{0}', space=vmem, size = 0x10000, scoped, tag = 'output window, operand 0']
    #allocation5 [shape = 's32[2]{0}', space=sflag, size = 0x8, scoped, tag = 'scoped memory for tpu_custom_call.1']
    %18 = vsyncpa [#allocation5], 0
    %s19 = scalar_lea.sflag [#allocation5], 1
    %20 = vsyncpa %s19, 0
    loop: start=0, step=1, limit=6
    $region2: #{tpu_custom_call.1} parent=1 // loop_pre_header
      _
    $region3: #{tpu_custom_call.1} parent=1 // loop_header
      %s22 = sphi 0, %s26
      %p23 = scmp.ge.s32.totalorder %s22, 6
      %s29 = sphi 0, %s41
      %s30 = sphi 0, %s37
      %s31 = sphi 0, %s29
      %s32 = sphi 0, %s30
      %s33 = sphi 0, %s31
      %s34 = sphi 0, %s32
      %s44 = sphi 0, %s46
      %s47 = sphi 0, %s44
      %s48 = sphi 0, %s47
      %s64 = sphi 0, %s48
      %s68 = sphi 0, %s68
      %s70 = sphi 0, %s68
      %s71 = sphi 0, %s70
      %s85 = sphi 0, %s71
      %s89 = sphi 0, %s89
      %s91 = sphi 0, %s89
      %s92 = sphi 0, %s91
      %s106 = sphi 0, %s92
      %s112 = sphi 0, %s114
      %s115 = sphi 0, %s112
      %s116 = sphi 0, %s115
      %s132 = sphi 0, %s116
      %s138 = sphi 0, %s140
      %s141 = sphi 0, %s138
      %s142 = sphi 0, %s141
      %s158 = sphi 0, %s142
      %s164 = sphi 0, %s166
      %s167 = sphi 0, %s164
      %s168 = sphi 0, %s167
      %s184 = sphi 0, %s168
      %s190 = sphi 0, %s192
      %s193 = sphi 0, %s190
      %s194 = sphi 0, %s193
      %s210 = sphi 0, %s194
      %s216 = sphi 0, %s218
      %s219 = sphi 0, %s216
      %s220 = sphi 0, %s219
      %s236 = sphi 0, %s220
      %s242 = sphi 0, %s244
      %s245 = sphi 0, %s242
      %s246 = sphi 0, %s245
      %s262 = sphi 0, %s246
      %s268 = sphi 0, %s270
      %s271 = sphi 0, %s268
      %s272 = sphi 0, %s271
      %s288 = sphi 0, %s272
      %s294 = sphi 0, %s296
      %s297 = sphi 0, %s294
      %s298 = sphi 0, %s297
      %s314 = sphi 0, %s298
      %s320 = sphi 0, %s322
      %s323 = sphi 0, %s320
      %s324 = sphi 0, %s323
      %s340 = sphi 0, %s324
      %s346 = sphi 0, %s348
      %s349 = sphi 0, %s346
      %s350 = sphi 0, %s349
      %s366 = sphi 0, %s350
      %s372 = sphi 0, %s374
      %s375 = sphi 0, %s372
      %s376 = sphi 0, %s375
      %s392 = sphi 0, %s376
    $region4: #{tpu_custom_call.1} parent=1 // loop_header_branch
      %25 = sbr.rel (%p23) target = $region8
    $region5: #{tpu_custom_call.1} parent=1 // loop_body
      %s27 = ssub.s32 %s22, 1
      %s28 = ssub.s32 %s22, 2
      %s35 = sadd.s32 1, %s30
      %p36 = scmp.ge.s32.totalorder %s35, 2
      %s37 = scalar_select %p36, 0, %s35
      %s38 = sadd.s32 1, %s29
      %s39 = scalar_select %p36, %s38, %s29
      %p40 = scmp.ge.s32.totalorder %s39, 2
      %s41 = scalar_select %p40, 0, %s39
      %s42 = ssub.s32 %s29, %s41
      %p43 = scmp.eq.s32.totalorder %s42, 0
      %s45 = sadd.s32 %s44, 1
      %s46 = scalar_select %p43, %s44, %s45
      %p49 = pneg %p43
      %p50 = scmp.eq.s32.totalorder %s22, 3
      %p51 = por %p49, %p50
      %p52 = scmp.ne.s32.totalorder %s44, %s47
      %p53 = scmp.eq.s32.totalorder %s22, 0
      %p54 = por %p52, %p53
      %p55 = scmp.ne.s32.totalorder %s44, %s47
      %p56 = scmp.eq.s32.totalorder %s27, 3
      %p57 = por %p55, %p56
      %p58 = scmp.ne.s32.totalorder %s47, %s48
      %p59 = scmp.eq.s32.totalorder %s27, 0
      %p60 = por %p58, %p59
      %p61 = scmp.ne.s32.totalorder %s47, %s48
      %p62 = scmp.eq.s32.totalorder %s28, 3
      %p63 = por %p61, %p62
      %p65 = scmp.ne.s32.totalorder %s48, %s64
      %p66 = scmp.eq.s32.totalorder %s28, 0
      %p67 = por %p65, %p66
      %s69 = sadd.s32 %s68, 1
      %p72 = scmp.eq.s32.totalorder %s22, 3
      %p73 = scmp.ne.s32.totalorder %s68, %s70
      %p74 = scmp.eq.s32.totalorder %s22, 0
      %p75 = por %p73, %p74
      %p76 = scmp.ne.s32.totalorder %s68, %s70
      %p77 = scmp.eq.s32.totalorder %s27, 3
      %p78 = por %p76, %p77
      %p79 = scmp.ne.s32.totalorder %s70, %s71
      %p80 = scmp.eq.s32.totalorder %s27, 0
      %p81 = por %p79, %p80
      %p82 = scmp.ne.s32.totalorder %s70, %s71
      %p83 = scmp.eq.s32.totalorder %s28, 3
      %p84 = por %p82, %p83
      %p86 = scmp.ne.s32.totalorder %s71, %s85
      %p87 = scmp.eq.s32.totalorder %s28, 0
      %p88 = por %p86, %p87
      %s90 = sadd.s32 %s89, 1
      %p93 = scmp.eq.s32.totalorder %s22, 3
      %p94 = scmp.ne.s32.totalorder %s89, %s91
      %p95 = scmp.eq.s32.totalorder %s22, 0
      %p96 = por %p94, %p95
      %p97 = scmp.ne.s32.totalorder %s89, %s91
      %p98 = scmp.eq.s32.totalorder %s27, 3
      %p99 = por %p97, %p98
      %p100 = scmp.ne.s32.totalorder %s91, %s92
      %p101 = scmp.eq.s32.totalorder %s27, 0
      %p102 = por %p100, %p101
      %p103 = scmp.ne.s32.totalorder %s91, %s92
      %p104 = scmp.eq.s32.totalorder %s28, 3
      %p105 = por %p103, %p104
      %p107 = scmp.ne.s32.totalorder %s92, %s106
      %p108 = scmp.eq.s32.totalorder %s28, 0
      %p109 = por %p107, %p108
      %s110 = ssub.s32 %s30, %s37
      %p111 = scmp.eq.s32.totalorder %s110, 0
      %s113 = sadd.s32 %s112, 1
      %s114 = scalar_select %p111, %s112, %s113
      %p117 = pneg %p111
      %p118 = scmp.eq.s32.totalorder %s22, 3
      %p119 = por %p117, %p118
      %p120 = scmp.ne.s32.totalorder %s112, %s115
      %p121 = scmp.eq.s32.totalorder %s22, 0
      %p122 = por %p120, %p121
      %p123 = scmp.ne.s32.totalorder %s112, %s115
      %p124 = scmp.eq.s32.totalorder %s27, 3
      %p125 = por %p123, %p124
      %p126 = scmp.ne.s32.totalorder %s115, %s116
      %p127 = scmp.eq.s32.totalorder %s27, 0
      %p128 = por %p126, %p127
      %p129 = scmp.ne.s32.totalorder %s115, %s116
      %p130 = scmp.eq.s32.totalorder %s28, 3
      %p131 = por %p129, %p130
      %p133 = scmp.ne.s32.totalorder %s116, %s132
      %p134 = scmp.eq.s32.totalorder %s28, 0
      %p135 = por %p133, %p134
      %s136 = ssub.s32 %s30, %s37
      %p137 = scmp.eq.s32.totalorder %s136, 0
      %s139 = sadd.s32 %s138, 1
      %s140 = scalar_select %p137, %s138, %s139
      %p143 = pneg %p137
      %p144 = scmp.eq.s32.totalorder %s22, 3
      %p145 = por %p143, %p144
      %p146 = scmp.ne.s32.totalorder %s138, %s141
      %p147 = scmp.eq.s32.totalorder %s22, 0
      %p148 = por %p146, %p147
      %p149 = scmp.ne.s32.totalorder %s138, %s141
      %p150 = scmp.eq.s32.totalorder %s27, 3
      %p151 = por %p149, %p150
      %p152 = scmp.ne.s32.totalorder %s141, %s142
      %p153 = scmp.eq.s32.totalorder %s27, 0
      %p154 = por %p152, %p153
      %p155 = scmp.ne.s32.totalorder %s141, %s142
      %p156 = scmp.eq.s32.totalorder %s28, 3
      %p157 = por %p155, %p156
      %p159 = scmp.ne.s32.totalorder %s142, %s158
      %p160 = scmp.eq.s32.totalorder %s28, 0
      %p161 = por %p159, %p160
      %s162 = ssub.s32 %s30, %s37
      %p163 = scmp.eq.s32.totalorder %s162, 0
      %s165 = sadd.s32 %s164, 1
      %s166 = scalar_select %p163, %s164, %s165
      %p169 = pneg %p163
      %p170 = scmp.eq.s32.totalorder %s22, 3
      %p171 = por %p169, %p170
      %p172 = scmp.ne.s32.totalorder %s164, %s167
      %p173 = scmp.eq.s32.totalorder %s22, 0
      %p174 = por %p172, %p173
      %p175 = scmp.ne.s32.totalorder %s164, %s167
      %p176 = scmp.eq.s32.totalorder %s27, 3
      %p177 = por %p175, %p176
      %p178 = scmp.ne.s32.totalorder %s167, %s168
      %p179 = scmp.eq.s32.totalorder %s27, 0
      %p180 = por %p178, %p179
      %p181 = scmp.ne.s32.totalorder %s167, %s168
      %p182 = scmp.eq.s32.totalorder %s28, 3
      %p183 = por %p181, %p182
      %p185 = scmp.ne.s32.totalorder %s168, %s184
      %p186 = scmp.eq.s32.totalorder %s28, 0
      %p187 = por %p185, %p186
      %s188 = ssub.s32 %s30, %s37
      %p189 = scmp.eq.s32.totalorder %s188, 0
      %s191 = sadd.s32 %s190, 1
      %s192 = scalar_select %p189, %s190, %s191
      %p195 = pneg %p189
      %p196 = scmp.eq.s32.totalorder %s22, 3
      %p197 = por %p195, %p196
      %p198 = scmp.ne.s32.totalorder %s190, %s193
      %p199 = scmp.eq.s32.totalorder %s22, 0
      %p200 = por %p198, %p199
      %p201 = scmp.ne.s32.totalorder %s190, %s193
      %p202 = scmp.eq.s32.totalorder %s27, 3
      %p203 = por %p201, %p202
      %p204 = scmp.ne.s32.totalorder %s193, %s194
      %p205 = scmp.eq.s32.totalorder %s27, 0
      %p206 = por %p204, %p205
      %p207 = scmp.ne.s32.totalorder %s193, %s194
      %p208 = scmp.eq.s32.totalorder %s28, 3
      %p209 = por %p207, %p208
      %p211 = scmp.ne.s32.totalorder %s194, %s210
      %p212 = scmp.eq.s32.totalorder %s28, 0
      %p213 = por %p211, %p212
      %s214 = ssub.s32 %s30, %s37
      %p215 = scmp.eq.s32.totalorder %s214, 0
      %s217 = sadd.s32 %s216, 1
      %s218 = scalar_select %p215, %s216, %s217
      %p221 = pneg %p215
      %p222 = scmp.eq.s32.totalorder %s22, 3
      %p223 = por %p221, %p222
      %p224 = scmp.ne.s32.totalorder %s216, %s219
      %p225 = scmp.eq.s32.totalorder %s22, 0
      %p226 = por %p224, %p225
      %p227 = scmp.ne.s32.totalorder %s216, %s219
      %p228 = scmp.eq.s32.totalorder %s27, 3
      %p229 = por %p227, %p228
      %p230 = scmp.ne.s32.totalorder %s219, %s220
      %p231 = scmp.eq.s32.totalorder %s27, 0
      %p232 = por %p230, %p231
      %p233 = scmp.ne.s32.totalorder %s219, %s220
      %p234 = scmp.eq.s32.totalorder %s28, 3
      %p235 = por %p233, %p234
      %p237 = scmp.ne.s32.totalorder %s220, %s236
      %p238 = scmp.eq.s32.totalorder %s28, 0
      %p239 = por %p237, %p238
      %s240 = ssub.s32 %s30, %s37
      %p241 = scmp.eq.s32.totalorder %s240, 0
      %s243 = sadd.s32 %s242, 1
      %s244 = scalar_select %p241, %s242, %s243
      %p247 = pneg %p241
      %p248 = scmp.eq.s32.totalorder %s22, 3
      %p249 = por %p247, %p248
      %p250 = scmp.ne.s32.totalorder %s242, %s245
      %p251 = scmp.eq.s32.totalorder %s22, 0
      %p252 = por %p250, %p251
      %p253 = scmp.ne.s32.totalorder %s242, %s245
      %p254 = scmp.eq.s32.totalorder %s27, 3
      %p255 = por %p253, %p254
      %p256 = scmp.ne.s32.totalorder %s245, %s246
      %p257 = scmp.eq.s32.totalorder %s27, 0
      %p258 = por %p256, %p257
      %p259 = scmp.ne.s32.totalorder %s245, %s246
      %p260 = scmp.eq.s32.totalorder %s28, 3
      %p261 = por %p259, %p260
      %p263 = scmp.ne.s32.totalorder %s246, %s262
      %p264 = scmp.eq.s32.totalorder %s28, 0
      %p265 = por %p263, %p264
      %s266 = ssub.s32 %s30, %s37
      %p267 = scmp.eq.s32.totalorder %s266, 0
      %s269 = sadd.s32 %s268, 1
      %s270 = scalar_select %p267, %s268, %s269
      %p273 = pneg %p267
      %p274 = scmp.eq.s32.totalorder %s22, 3
      %p275 = por %p273, %p274
      %p276 = scmp.ne.s32.totalorder %s268, %s271
      %p277 = scmp.eq.s32.totalorder %s22, 0
      %p278 = por %p276, %p277
      %p279 = scmp.ne.s32.totalorder %s268, %s271
      %p280 = scmp.eq.s32.totalorder %s27, 3
      %p281 = por %p279, %p280
      %p282 = scmp.ne.s32.totalorder %s271, %s272
      %p283 = scmp.eq.s32.totalorder %s27, 0
      %p284 = por %p282, %p283
      %p285 = scmp.ne.s32.totalorder %s271, %s272
      %p286 = scmp.eq.s32.totalorder %s28, 3
      %p287 = por %p285, %p286
      %p289 = scmp.ne.s32.totalorder %s272, %s288
      %p290 = scmp.eq.s32.totalorder %s28, 0
      %p291 = por %p289, %p290
      %s292 = ssub.s32 %s30, %s37
      %p293 = scmp.eq.s32.totalorder %s292, 0
      %s295 = sadd.s32 %s294, 1
      %s296 = scalar_select %p293, %s294, %s295
      %p299 = pneg %p293
      %p300 = scmp.eq.s32.totalorder %s22, 3
      %p301 = por %p299, %p300
      %p302 = scmp.ne.s32.totalorder %s294, %s297
      %p303 = scmp.eq.s32.totalorder %s22, 0
      %p304 = por %p302, %p303
      %p305 = scmp.ne.s32.totalorder %s294, %s297
      %p306 = scmp.eq.s32.totalorder %s27, 3
      %p307 = por %p305, %p306
      %p308 = scmp.ne.s32.totalorder %s297, %s298
      %p309 = scmp.eq.s32.totalorder %s27, 0
      %p310 = por %p308, %p309
      %p311 = scmp.ne.s32.totalorder %s297, %s298
      %p312 = scmp.eq.s32.totalorder %s28, 3
      %p313 = por %p311, %p312
      %p315 = scmp.ne.s32.totalorder %s298, %s314
      %p316 = scmp.eq.s32.totalorder %s28, 0
      %p317 = por %p315, %p316
      %s318 = ssub.s32 %s30, %s37
      %p319 = scmp.eq.s32.totalorder %s318, 0
      %s321 = sadd.s32 %s320, 1
      %s322 = scalar_select %p319, %s320, %s321
      %p325 = pneg %p319
      %p326 = scmp.eq.s32.totalorder %s22, 3
      %p327 = por %p325, %p326
      %p328 = scmp.ne.s32.totalorder %s320, %s323
      %p329 = scmp.eq.s32.totalorder %s22, 0
      %p330 = por %p328, %p329
      %p331 = scmp.ne.s32.totalorder %s320, %s323
      %p332 = scmp.eq.s32.totalorder %s27, 3
      %p333 = por %p331, %p332
      %p334 = scmp.ne.s32.totalorder %s323, %s324
      %p335 = scmp.eq.s32.totalorder %s27, 0
      %p336 = por %p334, %p335
      %p337 = scmp.ne.s32.totalorder %s323, %s324
      %p338 = scmp.eq.s32.totalorder %s28, 3
      %p339 = por %p337, %p338
      %p341 = scmp.ne.s32.totalorder %s324, %s340
      %p342 = scmp.eq.s32.totalorder %s28, 0
      %p343 = por %p341, %p342
      %s344 = ssub.s32 %s30, %s37
      %p345 = scmp.eq.s32.totalorder %s344, 0
      %s347 = sadd.s32 %s346, 1
      %s348 = scalar_select %p345, %s346, %s347
      %p351 = pneg %p345
      %p352 = scmp.eq.s32.totalorder %s22, 3
      %p353 = por %p351, %p352
      %p354 = scmp.ne.s32.totalorder %s346, %s349
      %p355 = scmp.eq.s32.totalorder %s22, 0
      %p356 = por %p354, %p355
      %p357 = scmp.ne.s32.totalorder %s346, %s349
      %p358 = scmp.eq.s32.totalorder %s27, 3
      %p359 = por %p357, %p358
      %p360 = scmp.ne.s32.totalorder %s349, %s350
      %p361 = scmp.eq.s32.totalorder %s27, 0
      %p362 = por %p360, %p361
      %p363 = scmp.ne.s32.totalorder %s349, %s350
      %p364 = scmp.eq.s32.totalorder %s28, 3
      %p365 = por %p363, %p364
      %p367 = scmp.ne.s32.totalorder %s350, %s366
      %p368 = scmp.eq.s32.totalorder %s28, 0
      %p369 = por %p367, %p368
      %s370 = ssub.s32 %s29, %s41
      %p371 = scmp.eq.s32.totalorder %s370, 0
      %s373 = sadd.s32 %s372, 1
      %s374 = scalar_select %p371, %s372, %s373
      %p377 = pneg %p371
      %p378 = scmp.eq.s32.totalorder %s22, 3
      %p379 = por %p377, %p378
      %p380 = scmp.ne.s32.totalorder %s372, %s375
      %p381 = scmp.eq.s32.totalorder %s22, 0
      %p382 = por %p380, %p381
      %p383 = scmp.ne.s32.totalorder %s372, %s375
      %p384 = scmp.eq.s32.totalorder %s27, 3
      %p385 = por %p383, %p384
      %p386 = scmp.ne.s32.totalorder %s375, %s376
      %p387 = scmp.eq.s32.totalorder %s27, 0
      %p388 = por %p386, %p387
      %p389 = scmp.ne.s32.totalorder %s375, %s376
      %p390 = scmp.eq.s32.totalorder %s28, 3
      %p391 = por %p389, %p390
      %p393 = scmp.ne.s32.totalorder %s376, %s392
      %p394 = scmp.eq.s32.totalorder %s28, 0
      %p395 = por %p393, %p394
      %p396 = scmp.le.s32.totalorder 1, %s22
      %p397 = scmp.lt.s32.totalorder %s22, 5
      %p398 = pnand %p396, %p397
      %p399 = pneg %p398
      // Predicated region
      $region9: #{tpu_custom_call.1} parent=5 // pred_check
        _
      $region10: #{tpu_custom_call.1} parent=5 // pred_check_branch
        %401 = sbr.rel (%p398) target = $region12
      $region11: #{tpu_custom_call.1} parent=5 // pred_region
        %s402 = ssub.s32 %s22, 1
        // Predicated region
        $region13: #{tpu_custom_call.1} parent=11 // pred_check
          %p403 = pneg %p81
        $region14: #{tpu_custom_call.1} parent=11 // pred_check_branch
          %405 = sbr.rel (%p403) target = $region16
        $region15: #{tpu_custom_call.1} parent=11 // pred_region
          _
        $region16: #{tpu_custom_call.1} parent=11 // pred_fallthru
          _
        // Predicated region
        $region17: #{tpu_custom_call.1} parent=11 // pred_check
          %p406 = pneg %p102
        $region18: #{tpu_custom_call.1} parent=11 // pred_check_branch
          %408 = sbr.rel (%p406) target = $region20
        $region19: #{tpu_custom_call.1} parent=11 // pred_region
          _
        $region20: #{tpu_custom_call.1} parent=11 // pred_fallthru
          _
      $region12: #{tpu_custom_call.1} parent=5 // pred_fallthru
        _
      %p409 = scmp.lt.s32.totalorder %s22, 4
      // Predicated region
      $region21: #{tpu_custom_call.1} parent=5 // pred_check
        %p410 = pneg %p409
      $region22: #{tpu_custom_call.1} parent=5 // pred_check_branch
        %412 = sbr.rel (%p410) target = $region24
      $region23: #{tpu_custom_call.1} parent=5 // pred_region
        // Predicated region
        $region25: #{tpu_custom_call.1} parent=23 // pred_check
          %p413 = pneg %p54
        $region26: #{tpu_custom_call.1} parent=23 // pred_check_branch
          %415 = sbr.rel (%p413) target = $region28
        $region27: #{tpu_custom_call.1} parent=23 // pred_region
          %p416 = scmp.lt.s32.totalorder %s29, 1
          %s417 = scalar_select %p416, %s29, 1
          %s418 = smul.addr %s417, 8
          %s419 = smul.addr %s418, 8
          %s420 = scalar_lea.vmem %s0, %s419
        $region28: #{tpu_custom_call.1} parent=23 // pred_fallthru
          _
        // Predicated region
        $region29: #{tpu_custom_call.1} parent=23 // pred_check
          %p421 = pneg %p122
        $region30: #{tpu_custom_call.1} parent=23 // pred_check_branch
          %423 = sbr.rel (%p421) target = $region32
        $region31: #{tpu_custom_call.1} parent=23 // pred_region
          %p424 = scmp.lt.s32.totalorder %s30, 1
          %s425 = scalar_select %p424, %s30, 1
          %s426 = smul.addr %s425, 4
          %s427 = smul.addr %s426, 8
          %s428 = scalar_lea.vmem %s3, %s427
        $region32: #{tpu_custom_call.1} parent=23 // pred_fallthru
          _
        // Predicated region
        $region33: #{tpu_custom_call.1} parent=23 // pred_check
          %p429 = pneg %p148
        $region34: #{tpu_custom_call.1} parent=23 // pred_check_branch
          %431 = sbr.rel (%p429) target = $region36
        $region35: #{tpu_custom_call.1} parent=23 // pred_region
          %p432 = scmp.lt.s32.totalorder %s30, 1
          %s433 = scalar_select %p432, %s30, 1
          %s434 = smul.addr %s433, 4
          %s435 = smul.addr %s434, 8
          %s436 = scalar_lea.vmem %s4, %s435
        $region36: #{tpu_custom_call.1} parent=23 // pred_fallthru
          _
        // Predicated region
        $region37: #{tpu_custom_call.1} parent=23 // pred_check
          %p437 = pneg %p174
        $region38: #{tpu_custom_call.1} parent=23 // pred_check_branch
          %439 = sbr.rel (%p437) target = $region40
        $region39: #{tpu_custom_call.1} parent=23 // pred_region
          %p440 = scmp.lt.s32.totalorder %s30, 1
          %s441 = scalar_select %p440, %s30, 1
          %s442 = smul.addr %s441, 4
          %s443 = smul.addr %s442, 4
          %s444 = scalar_lea.vmem %s5, %s443
        $region40: #{tpu_custom_call.1} parent=23 // pred_fallthru
          _
        // Predicated region
        $region41: #{tpu_custom_call.1} parent=23 // pred_check
          %p445 = pneg %p200
        $region42: #{tpu_custom_call.1} parent=23 // pred_check_branch
          %447 = sbr.rel (%p445) target = $region44
        $region43: #{tpu_custom_call.1} parent=23 // pred_region
          %p448 = scmp.lt.s32.totalorder %s30, 1
          %s449 = scalar_select %p448, %s30, 1
          %s450 = smul.addr %s449, 4
          %s451 = smul.addr %s450, 8
          %s452 = scalar_lea.vmem %s6, %s451
        $region44: #{tpu_custom_call.1} parent=23 // pred_fallthru
          _
        // Predicated region
        $region45: #{tpu_custom_call.1} parent=23 // pred_check
          %p453 = pneg %p226
        $region46: #{tpu_custom_call.1} parent=23 // pred_check_branch
          %455 = sbr.rel (%p453) target = $region48
        $region47: #{tpu_custom_call.1} parent=23 // pred_region
          %p456 = scmp.lt.s32.totalorder %s30, 1
          %s457 = scalar_select %p456, %s30, 1
          %s458 = smul.addr %s457, 4
          %s459 = smul.addr %s458, 4
          %s460 = scalar_lea.vmem %s7, %s459
        $region48: #{tpu_custom_call.1} parent=23 // pred_fallthru
          _
        // Predicated region
        $region49: #{tpu_custom_call.1} parent=23 // pred_check
          %p461 = pneg %p252
        $region50: #{tpu_custom_call.1} parent=23 // pred_check_branch
          %463 = sbr.rel (%p461) target = $region52
        $region51: #{tpu_custom_call.1} parent=23 // pred_region
          %p464 = scmp.lt.s32.totalorder %s30, 1
          %s465 = scalar_select %p464, %s30, 1
          %s466 = smul.addr %s465, 4
          %s467 = smul.addr %s466, 8
          %s468 = scalar_lea.vmem %s8, %s467
        $region52: #{tpu_custom_call.1} parent=23 // pred_fallthru
          _
        // Predicated region
        $region53: #{tpu_custom_call.1} parent=23 // pred_check
          %p469 = pneg %p278
        $region54: #{tpu_custom_call.1} parent=23 // pred_check_branch
          %471 = sbr.rel (%p469) target = $region56
        $region55: #{tpu_custom_call.1} parent=23 // pred_region
          %p472 = scmp.lt.s32.totalorder %s30, 1
          %s473 = scalar_select %p472, %s30, 1
          %s474 = smul.addr %s473, 8
          %s475 = scalar_lea.vmem %s9, %s474
        $region56: #{tpu_custom_call.1} parent=23 // pred_fallthru
          _
        // Predicated region
        $region57: #{tpu_custom_call.1} parent=23 // pred_check
          %p476 = pneg %p304
        $region58: #{tpu_custom_call.1} parent=23 // pred_check_branch
          %478 = sbr.rel (%p476) target = $region60
        $region59: #{tpu_custom_call.1} parent=23 // pred_region
          %p479 = scmp.lt.s32.totalorder %s30, 1
          %s480 = scalar_select %p479, %s30, 1
          %s481 = smul.addr %s480, 8
          %s482 = scalar_lea.vmem %s10, %s481
        $region60: #{tpu_custom_call.1} parent=23 // pred_fallthru
          _
        // Predicated region
        $region61: #{tpu_custom_call.1} parent=23 // pred_check
          %p483 = pneg %p330
        $region62: #{tpu_custom_call.1} parent=23 // pred_check_branch
          %485 = sbr.rel (%p483) target = $region64
        $region63: #{tpu_custom_call.1} parent=23 // pred_region
          %p486 = scmp.lt.s32.totalorder %s30, 1
          %s487 = scalar_select %p486, %s30, 1
          %s488 = smul.addr %s487, 4
          %s489 = smul.addr %s488, 8
          %s490 = scalar_lea.vmem %s11, %s489
        $region64: #{tpu_custom_call.1} parent=23 // pred_fallthru
          _
        // Predicated region
        $region65: #{tpu_custom_call.1} parent=23 // pred_check
          %p491 = pneg %p356
        $region66: #{tpu_custom_call.1} parent=23 // pred_check_branch
          %493 = sbr.rel (%p491) target = $region68
        $region67: #{tpu_custom_call.1} parent=23 // pred_region
          %p494 = scmp.lt.s32.totalorder %s30, 1
          %s495 = scalar_select %p494, %s30, 1
          %s496 = smul.addr %s495, 4
          %s497 = smul.addr %s496, 8
          %s498 = scalar_lea.vmem %s12, %s497
        $region68: #{tpu_custom_call.1} parent=23 // pred_fallthru
          _
      $region24: #{tpu_custom_call.1} parent=5 // pred_fallthru
        _
      %p499 = scmp.le.s32.totalorder 1, %s22
      %p500 = scmp.lt.s32.totalorder %s22, 5
      %p501 = pnand %p499, %p500
      %p502 = pneg %p501
      // Predicated region
      $region69: #{tpu_custom_call.1} parent=5 // pred_check
        _
      $region70: #{tpu_custom_call.1} parent=5 // pred_check_branch
        %504 = sbr.rel (%p501) target = $region72
      $region71: #{tpu_custom_call.1} parent=5 // pred_region
        %s505 = ssub.s32 %s22, 1
        %p506 = scmp.lt.s32.totalorder %s31, 1
        %s507 = scalar_select %p506, %s31, 1
        %s508 = smul.addr %s507, 8
        %s509 = smul.addr %s508, 8
        %s510 = scalar_lea.vmem %s0, %s509
        %p511 = pneg %p60
        %p512 = pneg %p57
        %p513 = pneg %p81
        %p514 = pneg %p78
        %p515 = pneg %p102
        %p516 = pneg %p99
        %p517 = scmp.lt.s32.totalorder %s32, 1
        %s518 = scalar_select %p517, %s32, 1
        %s519 = smul.addr %s518, 4
        %s520 = smul.addr %s519, 8
        %s521 = scalar_lea.vmem %s3, %s520
        %p522 = pneg %p128
        %p523 = pneg %p125
        %p524 = scmp.lt.s32.totalorder %s32, 1
        %s525 = scalar_select %p524, %s32, 1
        %s526 = smul.addr %s525, 4
        %s527 = smul.addr %s526, 8
        %s528 = scalar_lea.vmem %s4, %s527
        %p529 = pneg %p154
        %p530 = pneg %p151
        %p531 = scmp.lt.s32.totalorder %s32, 1
        %s532 = scalar_select %p531, %s32, 1
        %s533 = smul.addr %s532, 4
        %s534 = smul.addr %s533, 4
        %s535 = scalar_lea.vmem %s5, %s534
        %p536 = pneg %p180
        %p537 = pneg %p177
        %p538 = scmp.lt.s32.totalorder %s32, 1
        %s539 = scalar_select %p538, %s32, 1
        %s540 = smul.addr %s539, 4
        %s541 = smul.addr %s540, 8
        %s542 = scalar_lea.vmem %s6, %s541
        %p543 = pneg %p206
        %p544 = pneg %p203
        %p545 = scmp.lt.s32.totalorder %s32, 1
        %s546 = scalar_select %p545, %s32, 1
        %s547 = smul.addr %s546, 4
        %s548 = smul.addr %s547, 4
        %s549 = scalar_lea.vmem %s7, %s548
        %p550 = pneg %p232
        %p551 = pneg %p229
        %p552 = scmp.lt.s32.totalorder %s32, 1
        %s553 = scalar_select %p552, %s32, 1
        %s554 = smul.addr %s553, 4
        %s555 = smul.addr %s554, 8
        %s556 = scalar_lea.vmem %s8, %s555
        %p557 = pneg %p258
        %p558 = pneg %p255
        %p559 = scmp.lt.s32.totalorder %s32, 1
        %s560 = scalar_select %p559, %s32, 1
        %s561 = smul.addr %s560, 8
        %s562 = scalar_lea.vmem %s9, %s561
        %p563 = pneg %p284
        %p564 = pneg %p281
        %p565 = scmp.lt.s32.totalorder %s32, 1
        %s566 = scalar_select %p565, %s32, 1
        %s567 = smul.addr %s566, 8
        %s568 = scalar_lea.vmem %s10, %s567
        %p569 = pneg %p310
        %p570 = pneg %p307
        %p571 = scmp.lt.s32.totalorder %s32, 1
        %s572 = scalar_select %p571, %s32, 1
        %s573 = smul.addr %s572, 4
        %s574 = smul.addr %s573, 8
        %s575 = scalar_lea.vmem %s11, %s574
        %p576 = pneg %p336
        %p577 = pneg %p333
        %p578 = scmp.lt.s32.totalorder %s32, 1
        %s579 = scalar_select %p578, %s32, 1
        %s580 = smul.addr %s579, 4
        %s581 = smul.addr %s580, 8
        %s582 = scalar_lea.vmem %s12, %s581
        %p583 = pneg %p362
        %p584 = pneg %p359
        %p585 = pneg %p388
        %p586 = pneg %p385
        %s587 = sand.u32 %s375, 1
        %s588 = scalar_lea.sflag [#allocation5], %s587
        %s589 = sand.u32 %s375, 1
        %s590 = smul.addr %s589, 64
        %s591 = scalar_lea.vmem [#allocation4], %s590
        %p592 = scmp.lt.s32.totalorder %s31, 1
        %s593 = scalar_select %p592, %s31, 1
        %s594 = smul.addr %s593, 8
        %s595 = smul.addr %s594, 8
        %s596 = scalar_lea.vmem %s0, %s595
        %p597 = scmp.lt.s32.totalorder %s32, 1
        %s598 = scalar_select %p597, %s32, 1
        %s599 = smul.addr %s598, 4
        %s600 = smul.addr %s599, 8
        %s601 = scalar_lea.vmem %s3, %s600
        %p602 = scmp.lt.s32.totalorder %s32, 1
        %s603 = scalar_select %p602, %s32, 1
        %s604 = smul.addr %s603, 4
        %s605 = smul.addr %s604, 8
        %s606 = scalar_lea.vmem %s4, %s605
        %p607 = scmp.lt.s32.totalorder %s32, 1
        %s608 = scalar_select %p607, %s32, 1
        %s609 = smul.addr %s608, 4
        %s610 = smul.addr %s609, 4
        %s611 = scalar_lea.vmem %s5, %s610
        %p612 = scmp.lt.s32.totalorder %s32, 1
        %s613 = scalar_select %p612, %s32, 1
        %s614 = smul.addr %s613, 4
        %s615 = smul.addr %s614, 8
        %s616 = scalar_lea.vmem %s6, %s615
        %p617 = scmp.lt.s32.totalorder %s32, 1
        %s618 = scalar_select %p617, %s32, 1
        %s619 = smul.addr %s618, 4
        %s620 = smul.addr %s619, 4
        %s621 = scalar_lea.vmem %s7, %s620
        %p622 = scmp.lt.s32.totalorder %s32, 1
        %s623 = scalar_select %p622, %s32, 1
        %s624 = smul.addr %s623, 4
        %s625 = smul.addr %s624, 8
        %s626 = scalar_lea.vmem %s8, %s625
        %p627 = scmp.lt.s32.totalorder %s32, 1
        %s628 = scalar_select %p627, %s32, 1
        %s629 = smul.addr %s628, 8
        %s630 = scalar_lea.vmem %s9, %s629
        %p631 = scmp.lt.s32.totalorder %s32, 1
        %s632 = scalar_select %p631, %s32, 1
        %s633 = smul.addr %s632, 8
        %s634 = scalar_lea.vmem %s10, %s633
        %p635 = scmp.lt.s32.totalorder %s32, 1
        %s636 = scalar_select %p635, %s32, 1
        %s637 = smul.addr %s636, 4
        %s638 = smul.addr %s637, 8
        %s639 = scalar_lea.vmem %s11, %s638
        %p640 = scmp.lt.s32.totalorder %s32, 1
        %s641 = scalar_select %p640, %s32, 1
        %s642 = smul.addr %s641, 4
        %s643 = smul.addr %s642, 8
        %s644 = scalar_lea.vmem %s12, %s643
        %p646 = scmp.eq.s32.totalorder %s32, 0
        // Predicated region
        $region73: #{tpu_custom_call.1} parent=71 // pred_check
          %p647 = pneg %p646
        $region74: #{tpu_custom_call.1} parent=71 // pred_check_branch
          %649 = sbr.rel (%p647) target = $region76
        $region75: #{tpu_custom_call.1} parent=71 // pred_region
          %v650 = vld [vmem:[%s596] sm:$0xff]
          %v651 = vld [vmem:[%s596 + $0x8] sm:$0xff]
          %v652 = vld [vmem:[%s596 + $0x10] sm:$0xff]
          %v653 = vld [vmem:[%s596 + $0x18] sm:$0xff]
          %v654 = vld [vmem:[%s596 + $0x20] sm:$0xff]
          %v655 = vld [vmem:[%s596 + $0x28] sm:$0xff]
          %v656 = vld [vmem:[%s596 + $0x30] sm:$0xff]
          %v657 = vld [vmem:[%s596 + $0x38] sm:$0xff]
          %v658 = vpack.c.bf16 %v652, %v650
          %v659 = vpack.c.bf16 %v653, %v651
          %v660 = vpack.c.bf16 %v656, %v654
          %v661 = vpack.c.bf16 %v657, %v655
          %v662 = vld [vmem:[%s1] sm:$0xf]
          %v663 = vld [vmem:[%s1 + $0x4] sm:$0xf]
          %v664 = vld [vmem:[%s1 + $0x8] sm:$0xf]
          %v665 = vld [vmem:[%s1 + $0xc] sm:$0xf]
          %v666 = vld [vmem:[%s2] sm:$0xff]
          %v667 = vld [vmem:[%s2 + $0x8] sm:$0xff]
          %v668 = vld [vmem:[%s2 + $0x10] sm:$0xff]
          %v669 = vld [vmem:[%s2 + $0x18] sm:$0xff]
          %671 = vset.pattern.permute.xlu0 0
          %672 = vperm.xlu0 %671, %v666
          %v673 = vpop.permute.xlu0 %672
          %676 = vset.pattern.permute.xlu0 0
          %677 = vperm.xlu0 %676, %v667
          %v678 = vpop.permute.xlu0 %677
          %681 = vset.pattern.permute.xlu0 0
          %682 = vperm.xlu0 %681, %v668
          %v683 = vpop.permute.xlu0 %682
          %686 = vset.pattern.permute.xlu0 0
          %687 = vperm.xlu0 %686, %v669
          %v688 = vpop.permute.xlu0 %687
          %v694 = vunpack.c.l.b16 %v662
          %v695 = vunpack.c.l.b16 %v663
          %v696 = vunpack.c.l.b16 %v664
          %v697 = vunpack.c.l.b16 %v665
          %v698 = vpack.c.b16 %v695, %v694
          %v699 = vpack.c.b16 %v697, %v696
          %vm700 = vcmask 261120
          %v702 = vsel %vm700, %v698, 0
          %v705 = vsel %vm700, %v699, 0
          %707 = vmatprep.subr.bf16.mxu0 %v659
          %708 = vmatpush1.bf16.msra.mxu0 %v658
          %709 = vmatprep.subr.bf16.mxu0 %v661
          %710 = vmatpush1.bf16.msra.mxu0 %v660
          %711 = vmatprep.subr.bf16.mxu0 0
          %712 = vmatpush1.bf16.msra.mxu0 0
          %713 = vmatprep.subr.bf16.mxu0 0
          %714 = vmatpush1.bf16.msra.mxu0 0
          %715 = vmatprep.subr.bf16.mxu0 0
          %716 = vmatpush1.bf16.msra.mxu0 0
          %717 = vmatprep.subr.bf16.mxu0 0
          %718 = vmatpush1.bf16.msra.mxu0 0
          %719 = vmatprep.subr.bf16.mxu0 0
          %720 = vmatpush1.bf16.msra.mxu0 0
          %721 = vmatprep.subr.bf16.mxu0 0
          %722 = vmatpush1.bf16.msra.mxu0 0
          %723 = vmatprep.subr.bf16.mxu0 0
          %724 = vmatpush1.bf16.msra.mxu0 0
          %725 = vmatprep.subr.bf16.mxu0 0
          %726 = vmatpush1.bf16.msra.mxu0 0
          %727 = vmatprep.subr.bf16.mxu0 0
          %728 = vmatpush1.bf16.msra.mxu0 0
          %729 = vmatprep.subr.bf16.mxu0 0
          %730 = vmatpush1.bf16.msra.mxu0 0
          %731 = vmatprep.subr.bf16.mxu0 0
          %732 = vmatpush1.bf16.msra.mxu0 0
          %733 = vmatprep.subr.bf16.mxu0 0
          %734 = vmatpush1.bf16.msra.mxu0 0
          %735 = vmatprep.subr.bf16.mxu0 0
          %736 = vmatpush1.bf16.msra.mxu0 0
          %737 = vmatprep.subr.bf16.mxu0 0
          %738 = vmatpush1.bf16.msra.mxu0 0
          %739 = vmatprep.mubr.bf16.mxu0 0
          %740 = vmatmul.mubr.bf16.gmra.mrb[0].mxu0 %v702
          %v741 = vpop.f32.mrb[0].mxu0
          %v742 = vadd.f32 %v673, %v741
          %v743 = vpop.f32.mrb[0].mxu0
          %v744 = vadd.f32 %v673, %v743
          %v745 = vpop.f32.mrb[0].mxu0
          %v746 = vadd.f32 %v678, %v745
          %v747 = vpop.f32.mrb[0].mxu0
          %v748 = vadd.f32 %v678, %v747
          %749 = vmatprep.mubr.bf16.mxu0 0
          %750 = vmatmul.mubr.bf16.gmra.mrb[0].mxu0 %v705
          %v751 = vpop.f32.mrb[0].mxu0
          %v752 = vadd.f32 %v683, %v751
          %v753 = vpop.f32.mrb[0].mxu0
          %v754 = vadd.f32 %v683, %v753
          %v755 = vpop.f32.mrb[0].mxu0
          %v756 = vadd.f32 %v688, %v755
          %v757 = vpop.f32.mrb[0].mxu0
          %v758 = vadd.f32 %v688, %v757
          %759 = vdwg.mxu0
          %760 = vst [vmem:[#allocation2] sm:$0xff] %v742
          %761 = vst [vmem:[#allocation2 + $0x8] sm:$0xff] %v744
          %762 = vst [vmem:[#allocation2 + $0x10] sm:$0xff] %v746
          %763 = vst [vmem:[#allocation2 + $0x18] sm:$0xff] %v748
          %764 = vst [vmem:[#allocation2 + $0x20] sm:$0xff] %v752
          %765 = vst [vmem:[#allocation2 + $0x28] sm:$0xff] %v754
          %766 = vst [vmem:[#allocation2 + $0x30] sm:$0xff] %v756
          %767 = vst [vmem:[#allocation2 + $0x38] sm:$0xff] %v758
          %768 = vst [vmem:[#allocation3] sm:$0xff] %v742
          %769 = vst [vmem:[#allocation3 + $0x8] sm:$0xff] %v744
          %770 = vst [vmem:[#allocation3 + $0x10] sm:$0xff] %v746
          %771 = vst [vmem:[#allocation3 + $0x18] sm:$0xff] %v748
          %772 = vst [vmem:[#allocation3 + $0x20] sm:$0xff] %v752
          %773 = vst [vmem:[#allocation3 + $0x28] sm:$0xff] %v754
          %774 = vst [vmem:[#allocation3 + $0x30] sm:$0xff] %v756
          %775 = vst [vmem:[#allocation3 + $0x38] sm:$0xff] %v758
        $region76: #{tpu_custom_call.1} parent=71 // pred_fallthru
          _
        %v776 = vld [vmem:[#allocation2] sm:$0xff]
        %v777 = vld [vmem:[#allocation2 + $0x8] sm:$0xff]
        %v778 = vld [vmem:[#allocation2 + $0x10] sm:$0xff]
        %v779 = vld [vmem:[#allocation2 + $0x18] sm:$0xff]
        %v780 = vld [vmem:[#allocation2 + $0x20] sm:$0xff]
        %v781 = vld [vmem:[#allocation2 + $0x28] sm:$0xff]
        %v782 = vld [vmem:[#allocation2 + $0x30] sm:$0xff]
        %v783 = vld [vmem:[#allocation2 + $0x38] sm:$0xff]
        %v784 = vadd.f32 %v776, %v778
        %v785 = vadd.f32 %v784, %v780
        %v786 = vadd.f32 %v785, %v782
        %v787 = vrot.slane %v786, 4
        %v788 = vadd.f32 %v786, %v787
        %v789 = vrot.slane %v788, 2
        %v790 = vadd.f32 %v788, %v789
        %v791 = vrot.slane %v790, 1
        %v792 = vadd.f32 %v790, %v791
        %v793 = vadd.f32 %v777, %v779
        %v794 = vadd.f32 %v793, %v781
        %v795 = vadd.f32 %v794, %v783
        %v796 = vrot.slane %v795, 4
        %v797 = vadd.f32 %v795, %v796
        %v798 = vrot.slane %v797, 2
        %v799 = vadd.f32 %v797, %v798
        %v800 = vrot.slane %v799, 1
        %v801 = vadd.f32 %v799, %v800
        %v802 = vrcp.pop 32.0
        %v803 = vmul.f32 %v792, %v802
        %v804 = vmul.f32 %v801, %v802
        %v805 = vmul.f32 %v776, %v776
        %v806 = vmul.f32 %v777, %v777
        %v807 = vmul.f32 %v778, %v778
        %v808 = vmul.f32 %v779, %v779
        %v809 = vmul.f32 %v780, %v780
        %v810 = vmul.f32 %v781, %v781
        %v811 = vmul.f32 %v782, %v782
        %v812 = vmul.f32 %v783, %v783
        %v813 = vadd.f32 %v805, %v807
        %v814 = vadd.f32 %v813, %v809
        %v815 = vadd.f32 %v814, %v811
        %v816 = vrot.slane %v815, 4
        %v817 = vadd.f32 %v815, %v816
        %v818 = vrot.slane %v817, 2
        %v819 = vadd.f32 %v817, %v818
        %v820 = vrot.slane %v819, 1
        %v821 = vadd.f32 %v819, %v820
        %v822 = vadd.f32 %v806, %v808
        %v823 = vadd.f32 %v822, %v810
        %v824 = vadd.f32 %v823, %v812
        %v825 = vrot.slane %v824, 4
        %v826 = vadd.f32 %v824, %v825
        %v827 = vrot.slane %v826, 2
        %v828 = vadd.f32 %v826, %v827
        %v829 = vrot.slane %v828, 1
        %v830 = vadd.f32 %v828, %v829
        %v831 = vmul.f32 %v821, %v802
        %v832 = vmul.f32 %v830, %v802
        %v833 = vmul.f32 %v803, %v803
        %v834 = vmul.f32 %v804, %v804
        %v835 = vsub.f32 %v831, %v833
        %v836 = vsub.f32 %v832, %v834
        %v837 = vmax.f32 %v835, 0.0
        %v838 = vmax.f32 %v836, 0.0
        %v839 = vsub.f32 %v776, %v803
        %v840 = vsub.f32 %v777, %v804
        %v841 = vsub.f32 %v778, %v803
        %v842 = vsub.f32 %v779, %v804
        %v843 = vsub.f32 %v780, %v803
        %v844 = vsub.f32 %v781, %v804
        %v845 = vsub.f32 %v782, %v803
        %v846 = vsub.f32 %v783, %v804
        %v847 = vadd.f32 %v837, 1e-05
        %v848 = vadd.f32 %v838, 1e-05
        %v849 = vrsqrt.pop %v847
        %v850 = vrsqrt.pop %v848
        %v851 = vmul.f32 %v839, %v849
        %v852 = vmul.f32 %v840, %v850
        %v853 = vmul.f32 %v841, %v849
        %v854 = vmul.f32 %v842, %v850
        %v855 = vmul.f32 %v843, %v849
        %v856 = vmul.f32 %v844, %v850
        %v857 = vmul.f32 %v845, %v849
        %v858 = vmul.f32 %v846, %v850
        %v859 = vld [vmem:[%s601] sm:$0xff]
        %v860 = vld [vmem:[%s601 + $0x8] sm:$0xff]
        %v861 = vld [vmem:[%s601 + $0x10] sm:$0xff]
        %v862 = vld [vmem:[%s601 + $0x18] sm:$0xff]
        %864 = vset.pattern.permute.xlu0 0
        %865 = vperm.xlu0 %864, %v859
        %v866 = vpop.permute.xlu0 %865
        %869 = vset.pattern.permute.xlu0 0
        %870 = vperm.xlu0 %869, %v860
        %v871 = vpop.permute.xlu0 %870
        %874 = vset.pattern.permute.xlu0 0
        %875 = vperm.xlu0 %874, %v861
        %v876 = vpop.permute.xlu0 %875
        %879 = vset.pattern.permute.xlu0 0
        %880 = vperm.xlu0 %879, %v862
        %v881 = vpop.permute.xlu0 %880
        %v883 = vmul.f32 %v851, %v866
        %v884 = vmul.f32 %v852, %v866
        %v885 = vmul.f32 %v853, %v871
        %v886 = vmul.f32 %v854, %v871
        %v887 = vmul.f32 %v855, %v876
        %v888 = vmul.f32 %v856, %v876
        %v889 = vmul.f32 %v857, %v881
        %v890 = vmul.f32 %v858, %v881
        %v891 = vld [vmem:[%s606] sm:$0xff]
        %v892 = vld [vmem:[%s606 + $0x8] sm:$0xff]
        %v893 = vld [vmem:[%s606 + $0x10] sm:$0xff]
        %v894 = vld [vmem:[%s606 + $0x18] sm:$0xff]
        %896 = vset.pattern.permute.xlu0 0
        %897 = vperm.xlu0 %896, %v891
        %v898 = vpop.permute.xlu0 %897
        %901 = vset.pattern.permute.xlu0 0
        %902 = vperm.xlu0 %901, %v892
        %v903 = vpop.permute.xlu0 %902
        %906 = vset.pattern.permute.xlu0 0
        %907 = vperm.xlu0 %906, %v893
        %v908 = vpop.permute.xlu0 %907
        %911 = vset.pattern.permute.xlu0 0
        %912 = vperm.xlu0 %911, %v894
        %v913 = vpop.permute.xlu0 %912
        %v915 = vadd.f32 %v883, %v898
        %v916 = vadd.f32 %v884, %v898
        %v917 = vadd.f32 %v885, %v903
        %v918 = vadd.f32 %v886, %v903
        %v919 = vadd.f32 %v887, %v908
        %v920 = vadd.f32 %v888, %v908
        %v921 = vadd.f32 %v889, %v913
        %v922 = vadd.f32 %v890, %v913
        %v923 = vld [vmem:[%s611] sm:$0xf]
        %v924 = vld [vmem:[%s611 + $0x4] sm:$0xf]
        %v925 = vld [vmem:[%s611 + $0x8] sm:$0xf]
        %v926 = vld [vmem:[%s611 + $0xc] sm:$0xf]
        %v927 = vpack.c.bf16 %v917, %v915
        %v928 = vpack.c.bf16 %v918, %v916
        %v929 = vpack.c.bf16 %v921, %v919
        %v930 = vpack.c.bf16 %v922, %v920
        %v931 = vld [vmem:[%s616] sm:$0xff]
        %v932 = vld [vmem:[%s616 + $0x8] sm:$0xff]
        %v933 = vld [vmem:[%s616 + $0x10] sm:$0xff]
        %v934 = vld [vmem:[%s616 + $0x18] sm:$0xff]
        %936 = vset.pattern.permute.xlu0 0
        %937 = vperm.xlu0 %936, %v931
        %v938 = vpop.permute.xlu0 %937
        %941 = vset.pattern.permute.xlu0 0
        %942 = vperm.xlu0 %941, %v932
        %v943 = vpop.permute.xlu0 %942
        %946 = vset.pattern.permute.xlu0 0
        %947 = vperm.xlu0 %946, %v933
        %v948 = vpop.permute.xlu0 %947
        %951 = vset.pattern.permute.xlu0 0
        %952 = vperm.xlu0 %951, %v934
        %v953 = vpop.permute.xlu0 %952
        %v959 = vunpack.c.l.b16 %v923
        %v960 = vunpack.c.l.b16 %v924
        %v961 = vunpack.c.l.b16 %v925
        %v962 = vunpack.c.l.b16 %v926
        %v963 = vpack.c.b16 %v960, %v959
        %v964 = vpack.c.b16 %v962, %v961
        %vm965 = vcmask 261120
        %v967 = vsel %vm965, %v963, 0
        %v970 = vsel %vm965, %v964, 0
        %972 = vmatprep.subr.bf16.mxu0 %v928
        %973 = vmatpush1.bf16.msra.mxu0 %v927
        %974 = vmatprep.subr.bf16.mxu0 %v930
        %975 = vmatpush1.bf16.msra.mxu0 %v929
        %976 = vmatprep.subr.bf16.mxu0 0
        %977 = vmatpush1.bf16.msra.mxu0 0
        %978 = vmatprep.subr.bf16.mxu0 0
        %979 = vmatpush1.bf16.msra.mxu0 0
        %980 = vmatprep.subr.bf16.mxu0 0
        %981 = vmatpush1.bf16.msra.mxu0 0
        %982 = vmatprep.subr.bf16.mxu0 0
        %983 = vmatpush1.bf16.msra.mxu0 0
        %984 = vmatprep.subr.bf16.mxu0 0
        %985 = vmatpush1.bf16.msra.mxu0 0
        %986 = vmatprep.subr.bf16.mxu0 0
        %987 = vmatpush1.bf16.msra.mxu0 0
        %988 = vmatprep.subr.bf16.mxu0 0
        %989 = vmatpush1.bf16.msra.mxu0 0
        %990 = vmatprep.subr.bf16.mxu0 0
        %991 = vmatpush1.bf16.msra.mxu0 0
        %992 = vmatprep.subr.bf16.mxu0 0
        %993 = vmatpush1.bf16.msra.mxu0 0
        %994 = vmatprep.subr.bf16.mxu0 0
        %995 = vmatpush1.bf16.msra.mxu0 0
        %996 = vmatprep.subr.bf16.mxu0 0
        %997 = vmatpush1.bf16.msra.mxu0 0
        %998 = vmatprep.subr.bf16.mxu0 0
        %999 = vmatpush1.bf16.msra.mxu0 0
        %1000 = vmatprep.subr.bf16.mxu0 0
        %1001 = vmatpush1.bf16.msra.mxu0 0
        %1002 = vmatprep.subr.bf16.mxu0 0
        %1003 = vmatpush1.bf16.msra.mxu0 0
        %1004 = vmatprep.mubr.bf16.mxu0 0
        %1005 = vmatmul.mubr.bf16.gmra.mrb[0].mxu0 %v967
        %v1006 = vpop.f32.mrb[0].mxu0
        %v1007 = vadd.f32 %v938, %v1006
        %v1008 = vpop.f32.mrb[0].mxu0
        %v1009 = vadd.f32 %v938, %v1008
        %v1010 = vpop.f32.mrb[0].mxu0
        %v1011 = vadd.f32 %v943, %v1010
        %v1012 = vpop.f32.mrb[0].mxu0
        %v1013 = vadd.f32 %v943, %v1012
        %1014 = vmatprep.mubr.bf16.mxu0 0
        %1015 = vmatmul.mubr.bf16.gmra.mrb[0].mxu0 %v970
        %v1016 = vpop.f32.mrb[0].mxu0
        %v1017 = vadd.f32 %v948, %v1016
        %v1018 = vpop.f32.mrb[0].mxu0
        %v1019 = vadd.f32 %v948, %v1018
        %v1020 = vpop.f32.mrb[0].mxu0
        %v1021 = vadd.f32 %v953, %v1020
        %v1022 = vpop.f32.mrb[0].mxu0
        %v1023 = vadd.f32 %v953, %v1022
        %1024 = vdwg.mxu0
        %v1025 = vmul.f32 %v1007, 0.5
        %v1026 = vmul.f32 %v1009, 0.5
        %v1027 = vmul.f32 %v1011, 0.5
        %v1028 = vmul.f32 %v1013, 0.5
        %v1029 = vmul.f32 %v1017, 0.5
        %v1030 = vmul.f32 %v1019, 0.5
        %v1031 = vmul.f32 %v1021, 0.5
        %v1032 = vmul.f32 %v1023, 0.5
        %v1033 = vrcp.pop 1.4142135
        %v1034 = vmul.f32 %v1007, %v1033
        %v1035 = vmul.f32 %v1009, %v1033
        %v1036 = vmul.f32 %v1011, %v1033
        %v1037 = vmul.f32 %v1013, %v1033
        %v1038 = vmul.f32 %v1017, %v1033
        %v1039 = vmul.f32 %v1019, %v1033
        %v1040 = vmul.f32 %v1021, %v1033
        %v1041 = vmul.f32 %v1023, %v1033
        %v1042 = verf.f32.pop %v1034
        %v1043 = verf.f32.pop %v1035
        %v1044 = verf.f32.pop %v1036
        %v1045 = verf.f32.pop %v1037
        %v1046 = verf.f32.pop %v1038
        %v1047 = verf.f32.pop %v1039
        %v1048 = verf.f32.pop %v1040
        %v1049 = verf.f32.pop %v1041
        %v1050 = vadd.f32 %v1042, 1.0
        %v1051 = vadd.f32 %v1043, 1.0
        %v1052 = vadd.f32 %v1044, 1.0
        %v1053 = vadd.f32 %v1045, 1.0
        %v1054 = vadd.f32 %v1046, 1.0
        %v1055 = vadd.f32 %v1047, 1.0
        %v1056 = vadd.f32 %v1048, 1.0
        %v1057 = vadd.f32 %v1049, 1.0
        %v1058 = vmul.f32 %v1025, %v1050
        %v1059 = vmul.f32 %v1026, %v1051
        %v1060 = vmul.f32 %v1027, %v1052
        %v1061 = vmul.f32 %v1028, %v1053
        %v1062 = vmul.f32 %v1029, %v1054
        %v1063 = vmul.f32 %v1030, %v1055
        %v1064 = vmul.f32 %v1031, %v1056
        %v1065 = vmul.f32 %v1032, %v1057
        %v1066 = vld [vmem:[%s621] sm:$0xf]
        %v1067 = vld [vmem:[%s621 + $0x4] sm:$0xf]
        %v1068 = vld [vmem:[%s621 + $0x8] sm:$0xf]
        %v1069 = vld [vmem:[%s621 + $0xc] sm:$0xf]
        %v1070 = vpack.c.bf16 %v1060, %v1058
        %v1071 = vpack.c.bf16 %v1061, %v1059
        %v1072 = vpack.c.bf16 %v1064, %v1062
        %v1073 = vpack.c.bf16 %v1065, %v1063
        %v1074 = vld [vmem:[%s626] sm:$0xff]
        %v1075 = vld [vmem:[%s626 + $0x8] sm:$0xff]
        %v1076 = vld [vmem:[%s626 + $0x10] sm:$0xff]
        %v1077 = vld [vmem:[%s626 + $0x18] sm:$0xff]
        %1079 = vset.pattern.permute.xlu0 0
        %1080 = vperm.xlu0 %1079, %v1074
        %v1081 = vpop.permute.xlu0 %1080
        %1084 = vset.pattern.permute.xlu0 0
        %1085 = vperm.xlu0 %1084, %v1075
        %v1086 = vpop.permute.xlu0 %1085
        %1089 = vset.pattern.permute.xlu0 0
        %1090 = vperm.xlu0 %1089, %v1076
        %v1091 = vpop.permute.xlu0 %1090
        %1094 = vset.pattern.permute.xlu0 0
        %1095 = vperm.xlu0 %1094, %v1077
        %v1096 = vpop.permute.xlu0 %1095
        %v1102 = vunpack.c.l.b16 %v1066
        %v1103 = vunpack.c.l.b16 %v1067
        %v1104 = vunpack.c.l.b16 %v1068
        %v1105 = vunpack.c.l.b16 %v1069
        %v1106 = vpack.c.b16 %v1103, %v1102
        %v1107 = vpack.c.b16 %v1105, %v1104
        %v1109 = vsel %vm965, %v1106, 0
        %v1112 = vsel %vm965, %v1107, 0
        %1114 = vmatprep.subr.bf16.mxu0 %v1071
        %1115 = vmatpush1.bf16.msra.mxu0 %v1070
        %1116 = vmatprep.subr.bf16.mxu0 %v1073
        %1117 = vmatpush1.bf16.msra.mxu0 %v1072
        %1118 = vmatprep.subr.bf16.mxu0 0
        %1119 = vmatpush1.bf16.msra.mxu0 0
        %1120 = vmatprep.subr.bf16.mxu0 0
        %1121 = vmatpush1.bf16.msra.mxu0 0
        %1122 = vmatprep.subr.bf16.mxu0 0
        %1123 = vmatpush1.bf16.msra.mxu0 0
        %1124 = vmatprep.subr.bf16.mxu0 0
        %1125 = vmatpush1.bf16.msra.mxu0 0
        %1126 = vmatprep.subr.bf16.mxu0 0
        %1127 = vmatpush1.bf16.msra.mxu0 0
        %1128 = vmatprep.subr.bf16.mxu0 0
        %1129 = vmatpush1.bf16.msra.mxu0 0
        %1130 = vmatprep.subr.bf16.mxu0 0
        %1131 = vmatpush1.bf16.msra.mxu0 0
        %1132 = vmatprep.subr.bf16.mxu0 0
        %1133 = vmatpush1.bf16.msra.mxu0 0
        %1134 = vmatprep.subr.bf16.mxu0 0
        %1135 = vmatpush1.bf16.msra.mxu0 0
        %1136 = vmatprep.subr.bf16.mxu0 0
        %1137 = vmatpush1.bf16.msra.mxu0 0
        %1138 = vmatprep.subr.bf16.mxu0 0
        %1139 = vmatpush1.bf16.msra.mxu0 0
        %1140 = vmatprep.subr.bf16.mxu0 0
        %1141 = vmatpush1.bf16.msra.mxu0 0
        %1142 = vmatprep.subr.bf16.mxu0 0
        %1143 = vmatpush1.bf16.msra.mxu0 0
        %1144 = vmatprep.subr.bf16.mxu0 0
        %1145 = vmatpush1.bf16.msra.mxu0 0
        %1146 = vmatprep.mubr.bf16.mxu0 0
        %1147 = vmatmul.mubr.bf16.gmra.mrb[0].mxu0 %v1109
        %v1148 = vpop.f32.mrb[0].mxu0
        %v1149 = vadd.f32 %v1081, %v1148
        %v1150 = vpop.f32.mrb[0].mxu0
        %v1151 = vadd.f32 %v1081, %v1150
        %v1152 = vpop.f32.mrb[0].mxu0
        %v1153 = vadd.f32 %v1086, %v1152
        %v1154 = vpop.f32.mrb[0].mxu0
        %v1155 = vadd.f32 %v1086, %v1154
        %1156 = vmatprep.mubr.bf16.mxu0 0
        %1157 = vmatmul.mubr.bf16.gmra.mrb[0].mxu0 %v1112
        %v1158 = vpop.f32.mrb[0].mxu0
        %v1159 = vadd.f32 %v1091, %v1158
        %v1160 = vpop.f32.mrb[0].mxu0
        %v1161 = vadd.f32 %v1091, %v1160
        %v1162 = vpop.f32.mrb[0].mxu0
        %v1163 = vadd.f32 %v1096, %v1162
        %v1164 = vpop.f32.mrb[0].mxu0
        %v1165 = vadd.f32 %v1096, %v1164
        %1166 = vdwg.mxu0
        %v1167 = vadd.f32 %v1149, %v1151
        %1168 = vadd.xlane.f32.xlu0 %v1167
        %v1169 = vpop.xlane.xlu0 %1168
        %v1170 = vadd.f32 %v1153, %v1155
        %1171 = vadd.xlane.f32.xlu0 %v1170
        %v1172 = vpop.xlane.xlu0 %1171
        %v1173 = vadd.f32 %v1159, %v1161
        %1174 = vadd.xlane.f32.xlu0 %v1173
        %v1175 = vpop.xlane.xlu0 %1174
        %v1176 = vadd.f32 %v1163, %v1165
        %1177 = vadd.xlane.f32.xlu0 %v1176
        %v1178 = vpop.xlane.xlu0 %1177
        %v1179 = vrcp.pop 256.0
        %v1180 = vmul.f32 %v1169, %v1179
        %v1181 = vmul.f32 %v1172, %v1179
        %v1182 = vmul.f32 %v1175, %v1179
        %v1183 = vmul.f32 %v1178, %v1179
        %v1184 = vld [vmem:[%s630] sm:$0xff]
        %v1185 = vld [vmem:[%s634] sm:$0xff]
        %v1187 = vsel %vm965, %v1184, 0
        %1189 = vmatprep.subr.mxu0 0.0
        %1190 = vmatpush1.msra.mxu0 %v1180
        %1191 = vmatprep.subr.mxu0 0.0
        %1192 = vmatpush1.msra.mxu0 %v1181
        %1193 = vmatprep.subr.mxu0 0.0
        %1194 = vmatpush1.msra.mxu0 %v1182
        %1195 = vmatprep.subr.mxu0 0.0
        %1196 = vmatpush1.msra.mxu0 %v1183
        %1197 = vmatprep.subr.mxu0 0.0
        %1198 = vmatpush1.msra.mxu0 0.0
        %1199 = vmatprep.subr.mxu0 0.0
        %1200 = vmatpush1.msra.mxu0 0.0
        %1201 = vmatprep.subr.mxu0 0.0
        %1202 = vmatpush1.msra.mxu0 0.0
        %1203 = vmatprep.subr.mxu0 0.0
        %1204 = vmatpush1.msra.mxu0 0.0
        %1205 = vmatprep.subr.mxu0 0.0
        %1206 = vmatpush1.msra.mxu0 0.0
        %1207 = vmatprep.subr.mxu0 0.0
        %1208 = vmatpush1.msra.mxu0 0.0
        %1209 = vmatprep.subr.mxu0 0.0
        %1210 = vmatpush1.msra.mxu0 0.0
        %1211 = vmatprep.subr.mxu0 0.0
        %1212 = vmatpush1.msra.mxu0 0.0
        %1213 = vmatprep.subr.mxu0 0.0
        %1214 = vmatpush1.msra.mxu0 0.0
        %1215 = vmatprep.subr.mxu0 0.0
        %1216 = vmatpush1.msra.mxu0 0.0
        %1217 = vmatprep.subr.mxu0 0.0
        %1218 = vmatpush1.msra.mxu0 0.0
        %1219 = vmatprep.subr.mxu0 0.0
        %1220 = vmatpush1.msra.mxu0 0.0
        %1221 = vmatprep.subr.mxu0 0.0
        %1222 = vmatpush1.msra.mxu0 0.0
        %1223 = vmatprep.subr.mxu0 0.0
        %1224 = vmatpush1.msra.mxu0 0.0
        %1225 = vmatprep.subr.mxu0 0.0
        %1226 = vmatpush1.msra.mxu0 0.0
        %1227 = vmatprep.subr.mxu0 0.0
        %1228 = vmatpush1.msra.mxu0 0.0
        %1229 = vmatprep.subr.mxu0 0.0
        %1230 = vmatpush1.msra.mxu0 0.0
        %1231 = vmatprep.subr.mxu0 0.0
        %1232 = vmatpush1.msra.mxu0 0.0
        %1233 = vmatprep.subr.mxu0 0.0
        %1234 = vmatpush1.msra.mxu0 0.0
        %1235 = vmatprep.subr.mxu0 0.0
        %1236 = vmatpush1.msra.mxu0 0.0
        %1237 = vmatprep.subr.mxu0 0.0
        %1238 = vmatpush1.msra.mxu0 0.0
        %1239 = vmatprep.subr.mxu0 0.0
        %1240 = vmatpush1.msra.mxu0 0.0
        %1241 = vmatprep.subr.mxu0 0.0
        %1242 = vmatpush1.msra.mxu0 0.0
        %1243 = vmatprep.subr.mxu0 0.0
        %1244 = vmatpush1.msra.mxu0 0.0
        %1245 = vmatprep.subr.mxu0 0.0
        %1246 = vmatpush1.msra.mxu0 0.0
        %1247 = vmatprep.subr.mxu0 0.0
        %1248 = vmatpush1.msra.mxu0 0.0
        %1249 = vmatprep.subr.mxu0 0.0
        %1250 = vmatpush1.msra.mxu0 0.0
        %1251 = vmatprep.subr.mxu0 0.0
        %1252 = vmatpush1.msra.mxu0 0.0
        %1253 = vmatprep.mubr.f32.mxu0 0.0
        %1254 = vmatmul.mubr.f32.gmra.mrb[0].mxu0 %v1187
        %v1255 = vpop.f32.mrb[0].mxu0
        %v1256 = vadd.f32 %v1185, %v1255
        %v1257 = vpop.f32.mrb[0].mxu0
        %1258 = vdwg.mxu0
        %v1259 = vmax.f32 %v1256, 0.0
        %v1260 = vld [vmem:[%s639] sm:$0xff]
        %v1261 = vld [vmem:[%s639 + $0x8] sm:$0xff]
        %v1262 = vld [vmem:[%s639 + $0x10] sm:$0xff]
        %v1263 = vld [vmem:[%s639 + $0x18] sm:$0xff]
        %v1264 = vld [vmem:[%s644] sm:$0xff]
        %v1265 = vld [vmem:[%s644 + $0x8] sm:$0xff]
        %v1266 = vld [vmem:[%s644 + $0x10] sm:$0xff]
        %v1267 = vld [vmem:[%s644 + $0x18] sm:$0xff]
        %vm1268 = vcmask 64512
        %v1270 = vsel %vm1268, %v1260, 0
        %v1273 = vsel %vm1268, %v1261, 0
        %v1276 = vsel %vm1268, %v1262, 0
        %v1279 = vsel %vm1268, %v1263, 0
        %1281 = vmatprep.subr.mxu0 0.0
        %1282 = vmatpush1.msra.mxu0 %v1259
        %1283 = vmatprep.subr.mxu0 0.0
        %1284 = vmatpush1.msra.mxu0 0.0
        %1285 = vmatprep.subr.mxu0 0.0
        %1286 = vmatpush1.msra.mxu0 0.0
        %1287 = vmatprep.subr.mxu0 0.0
        %1288 = vmatpush1.msra.mxu0 0.0
        %1289 = vmatprep.subr.mxu0 0.0
        %1290 = vmatpush1.msra.mxu0 0.0
        %1291 = vmatprep.subr.mxu0 0.0
        %1292 = vmatpush1.msra.mxu0 0.0
        %1293 = vmatprep.subr.mxu0 0.0
        %1294 = vmatpush1.msra.mxu0 0.0
        %1295 = vmatprep.subr.mxu0 0.0
        %1296 = vmatpush1.msra.mxu0 0.0
        %1297 = vmatprep.subr.mxu0 0.0
        %1298 = vmatpush1.msra.mxu0 0.0
        %1299 = vmatprep.subr.mxu0 0.0
        %1300 = vmatpush1.msra.mxu0 0.0
        %1301 = vmatprep.subr.mxu0 0.0
        %1302 = vmatpush1.msra.mxu0 0.0
        %1303 = vmatprep.subr.mxu0 0.0
        %1304 = vmatpush1.msra.mxu0 0.0
        %1305 = vmatprep.subr.mxu0 0.0
        %1306 = vmatpush1.msra.mxu0 0.0
        %1307 = vmatprep.subr.mxu0 0.0
        %1308 = vmatpush1.msra.mxu0 0.0
        %1309 = vmatprep.subr.mxu0 0.0
        %1310 = vmatpush1.msra.mxu0 0.0
        %1311 = vmatprep.subr.mxu0 0.0
        %1312 = vmatpush1.msra.mxu0 0.0
        %1313 = vmatprep.subr.mxu0 0.0
        %1314 = vmatpush1.msra.mxu0 0.0
        %1315 = vmatprep.subr.mxu0 0.0
        %1316 = vmatpush1.msra.mxu0 0.0
        %1317 = vmatprep.subr.mxu0 0.0
        %1318 = vmatpush1.msra.mxu0 0.0
        %1319 = vmatprep.subr.mxu0 0.0
        %1320 = vmatpush1.msra.mxu0 0.0
        %1321 = vmatprep.subr.mxu0 0.0
        %1322 = vmatpush1.msra.mxu0 0.0
        %1323 = vmatprep.subr.mxu0 0.0
        %1324 = vmatpush1.msra.mxu0 0.0
        %1325 = vmatprep.subr.mxu0 0.0
        %1326 = vmatpush1.msra.mxu0 0.0
        %1327 = vmatprep.subr.mxu0 0.0
        %1328 = vmatpush1.msra.mxu0 0.0
        %1329 = vmatprep.subr.mxu0 0.0
        %1330 = vmatpush1.msra.mxu0 0.0
        %1331 = vmatprep.subr.mxu0 0.0
        %1332 = vmatpush1.msra.mxu0 0.0
        %1333 = vmatprep.subr.mxu0 0.0
        %1334 = vmatpush1.msra.mxu0 0.0
        %1335 = vmatprep.subr.mxu0 0.0
        %1336 = vmatpush1.msra.mxu0 0.0
        %1337 = vmatprep.subr.mxu0 0.0
        %1338 = vmatpush1.msra.mxu0 0.0
        %1339 = vmatprep.subr.mxu0 0.0
        %1340 = vmatpush1.msra.mxu0 0.0
        %1341 = vmatprep.subr.mxu0 0.0
        %1342 = vmatpush1.msra.mxu0 0.0
        %1343 = vmatprep.subr.mxu0 0.0
        %1344 = vmatpush1.msra.mxu0 0.0
        %1345 = vmatprep.mubr.f32.mxu0 0.0
        %1346 = vmatmul.mubr.f32.gmra.mrb[0].mxu0 %v1270
        %v1347 = vpop.f32.mrb[0].mxu0
        %v1348 = vadd.f32 %v1264, %v1347
        %v1349 = vpop.f32.mrb[0].mxu0
        %1350 = vmatprep.mubr.f32.mxu0 0.0
        %1351 = vmatmul.mubr.f32.gmra.mrb[0].mxu0 %v1273
        %v1352 = vpop.f32.mrb[0].mxu0
        %v1353 = vadd.f32 %v1265, %v1352
        %v1354 = vpop.f32.mrb[0].mxu0
        %1355 = vmatprep.mubr.f32.mxu0 0.0
        %1356 = vmatmul.mubr.f32.gmra.mrb[0].mxu0 %v1276
        %v1357 = vpop.f32.mrb[0].mxu0
        %v1358 = vadd.f32 %v1266, %v1357
        %v1359 = vpop.f32.mrb[0].mxu0
        %1360 = vmatprep.mubr.f32.mxu0 0.0
        %1361 = vmatmul.mubr.f32.gmra.mrb[0].mxu0 %v1279
        %v1362 = vpop.f32.mrb[0].mxu0
        %v1363 = vadd.f32 %v1267, %v1362
        %v1364 = vpop.f32.mrb[0].mxu0
        %1365 = vdwg.mxu0
        %v1366 = vxor.u32 %v1348, 2147483648
        %v1367 = vxor.u32 %v1353, 2147483648
        %v1368 = vxor.u32 %v1358, 2147483648
        %v1369 = vxor.u32 %v1363, 2147483648
        %v1370 = vmul.f32 %v1366, 1.442695
        %v1371 = vpow.pop %v1370
        %v1372 = vmul.f32 %v1367, 1.442695
        %v1373 = vpow.pop %v1372
        %v1374 = vmul.f32 %v1368, 1.442695
        %v1375 = vpow.pop %v1374
        %v1376 = vmul.f32 %v1369, 1.442695
        %v1377 = vpow.pop %v1376
        %v1378 = vadd.f32 %v1371, 1.0
        %v1379 = vadd.f32 %v1373, 1.0
        %v1380 = vadd.f32 %v1375, 1.0
        %v1381 = vadd.f32 %v1377, 1.0
        %v1382 = vrcp.pop %v1378
        %v1383 = vmul.f32 1.0, %v1382
        %v1384 = vrcp.pop %v1379
        %v1385 = vmul.f32 1.0, %v1384
        %v1386 = vrcp.pop %v1380
        %v1387 = vmul.f32 1.0, %v1386
        %v1388 = vrcp.pop %v1381
        %v1389 = vmul.f32 1.0, %v1388
        %1391 = vset.pattern.permute.xlu0 0
        %1392 = vperm.xlu0 %1391, %v1383
        %v1393 = vpop.permute.xlu0 %1392
        %1396 = vset.pattern.permute.xlu0 0
        %1397 = vperm.xlu0 %1396, %v1385
        %v1398 = vpop.permute.xlu0 %1397
        %1401 = vset.pattern.permute.xlu0 0
        %1402 = vperm.xlu0 %1401, %v1387
        %v1403 = vpop.permute.xlu0 %1402
        %1406 = vset.pattern.permute.xlu0 0
        %1407 = vperm.xlu0 %1406, %v1389
        %v1408 = vpop.permute.xlu0 %1407
        %v1410 = vmul.f32 %v1149, %v1393
        %v1411 = vmul.f32 %v1151, %v1393
        %v1412 = vmul.f32 %v1153, %v1398
        %v1413 = vmul.f32 %v1155, %v1398
        %v1414 = vmul.f32 %v1159, %v1403
        %v1415 = vmul.f32 %v1161, %v1403
        %v1416 = vmul.f32 %v1163, %v1408
        %v1417 = vmul.f32 %v1165, %v1408
        %v1418 = vadd.f32 %v776, %v1410
        %v1419 = vadd.f32 %v777, %v1411
        %v1420 = vadd.f32 %v778, %v1412
        %v1421 = vadd.f32 %v779, %v1413
        %v1422 = vadd.f32 %v780, %v1414
        %v1423 = vadd.f32 %v781, %v1415
        %v1424 = vadd.f32 %v782, %v1416
        %v1425 = vadd.f32 %v783, %v1417
        %1426 = vst [vmem:[#allocation2] sm:$0xff] %v1418
        %1427 = vst [vmem:[#allocation2 + $0x8] sm:$0xff] %v1419
        %1428 = vst [vmem:[#allocation2 + $0x10] sm:$0xff] %v1420
        %1429 = vst [vmem:[#allocation2 + $0x18] sm:$0xff] %v1421
        %1430 = vst [vmem:[#allocation2 + $0x20] sm:$0xff] %v1422
        %1431 = vst [vmem:[#allocation2 + $0x28] sm:$0xff] %v1423
        %1432 = vst [vmem:[#allocation2 + $0x30] sm:$0xff] %v1424
        %1433 = vst [vmem:[#allocation2 + $0x38] sm:$0xff] %v1425
        %p1434 = scmp.eq.s32.totalorder %s32, 1
        // Predicated region
        $region77: #{tpu_custom_call.1} parent=71 // pred_check
          %p1435 = pneg %p1434
        $region78: #{tpu_custom_call.1} parent=71 // pred_check_branch
          %1437 = sbr.rel (%p1435) target = $region80
        $region79: #{tpu_custom_call.1} parent=71 // pred_region
          %v1438 = vld [vmem:[#allocation3] sm:$0xff]
          %v1439 = vld [vmem:[#allocation3 + $0x8] sm:$0xff]
          %v1440 = vld [vmem:[#allocation3 + $0x10] sm:$0xff]
          %v1441 = vld [vmem:[#allocation3 + $0x18] sm:$0xff]
          %v1442 = vld [vmem:[#allocation3 + $0x20] sm:$0xff]
          %v1443 = vld [vmem:[#allocation3 + $0x28] sm:$0xff]
          %v1444 = vld [vmem:[#allocation3 + $0x30] sm:$0xff]
          %v1445 = vld [vmem:[#allocation3 + $0x38] sm:$0xff]
          %v1446 = vadd.f32 %v1418, %v1438
          %v1447 = vadd.f32 %v1419, %v1439
          %v1448 = vadd.f32 %v1420, %v1440
          %v1449 = vadd.f32 %v1421, %v1441
          %v1450 = vadd.f32 %v1422, %v1442
          %v1451 = vadd.f32 %v1423, %v1443
          %v1452 = vadd.f32 %v1424, %v1444
          %v1453 = vadd.f32 %v1425, %v1445
          %1454 = vst [vmem:[%s591] sm:$0xff] %v1446
          %1455 = vst [vmem:[%s591 + $0x8] sm:$0xff] %v1447
          %1456 = vst [vmem:[%s591 + $0x10] sm:$0xff] %v1448
          %1457 = vst [vmem:[%s591 + $0x18] sm:$0xff] %v1449
          %1458 = vst [vmem:[%s591 + $0x20] sm:$0xff] %v1450
          %1459 = vst [vmem:[%s591 + $0x28] sm:$0xff] %v1451
          %1460 = vst [vmem:[%s591 + $0x30] sm:$0xff] %v1452
          %1461 = vst [vmem:[%s591 + $0x38] sm:$0xff] %v1453
        $region80: #{tpu_custom_call.1} parent=71 // pred_fallthru
          _
        %s1462 = sand.u32 %s375, 1
        %s1463 = scalar_lea.sflag [#allocation5], %s1462
        %s1464 = sand.u32 %s375, 1
        %s1465 = smul.addr %s1464, 64
        %s1466 = scalar_lea.vmem [#allocation4], %s1465
        // Predicated region
        $region81: #{tpu_custom_call.1} parent=71 // pred_check
          %p1467 = pneg %p385
        $region82: #{tpu_custom_call.1} parent=71 // pred_check_branch
          %1469 = sbr.rel (%p1467) target = $region84
        $region83: #{tpu_custom_call.1} parent=71 // pred_region
          %s1471 = ssub.s32 1024, 1024
          %1472 = vsyncadd %s1463, %s1471
          %s1473 = smul.addr %s31, 8
          %s1474 = smul.addr %s1473, 128
          %s1475 = scalar_lea.hbm %s13, %s1474
          %s1476 = sshll.u32 %s1466, 4
          %s1477 = int_to_ptr.vmem [resolvable:$true] %s1476
          %1482 = dma.vmem_to_hbm [thread:$0]  %s1477, 1024, %s1475, %s1463, 256, 256, 16
        $region84: #{tpu_custom_call.1} parent=71 // pred_fallthru
          _
      $region72: #{tpu_custom_call.1} parent=5 // pred_fallthru
        _
      %p1483 = scmp.le.s32.totalorder 2, %s22
      // Predicated region
      $region85: #{tpu_custom_call.1} parent=5 // pred_check
        %p1484 = pneg %p1483
      $region86: #{tpu_custom_call.1} parent=5 // pred_check_branch
        %1486 = sbr.rel (%p1484) target = $region88
      $region87: #{tpu_custom_call.1} parent=5 // pred_region
        %s1487 = ssub.s32 %s22, 2
        // Predicated region
        $region89: #{tpu_custom_call.1} parent=87 // pred_check
          %p1488 = pneg %p391
        $region90: #{tpu_custom_call.1} parent=87 // pred_check_branch
          %1490 = sbr.rel (%p1488) target = $region92
        $region91: #{tpu_custom_call.1} parent=87 // pred_region
          %s1491 = sand.u32 %s376, 1
          %s1492 = scalar_lea.sflag [#allocation5], %s1491
          %s1493 = sand.u32 %s376, 1
          %s1494 = smul.addr %s1493, 64
          %s1495 = scalar_lea.vmem [#allocation4], %s1494
          %1496 = dma.done %s1492, 1024
        $region92: #{tpu_custom_call.1} parent=87 // pred_fallthru
          _
      $region88: #{tpu_custom_call.1} parent=5 // pred_fallthru
        _
    $region6: #{tpu_custom_call.1} parent=1 // loop_footer
      %s26 = sadd.s32 1, %s22
    $region7: #{tpu_custom_call.1} parent=1 // loop_footer_branch
      %21 = sbr.rel target = $region3
    $region8: #{tpu_custom_call.1} parent=1 // loop_exit
      _
    %1497 = vsyncpa [#allocation5], 1
    %s1498 = scalar_lea.sflag [#allocation5], 1
    %1499 = vsyncpa %s1498, 1

</llo_original>
